<compile_context>
chip_gen: v5e
topology: v5e:2x2
jax: 0.10.0
libtpu: 0.0.40
codegen_flags: <defaults>
</compile_context>

<pallas_src>
import functools

import jax
import jax.numpy as jnp
from jax.experimental import pallas as pl
from jax.experimental.pallas import tpu as pltpu


def _attn_lstm_kernel(x_ref,      # [Tc, Bb, F+1]  x with context column (f32)
                      wih_ref,    # [F+1, 4*Hp]    gate-padded, compute dtype
                      whh_ref,    # [Hp, 4*Hp]     gate-padded, compute dtype
                      b_ref,      # [1, 4*Hp]      b_ih + b_hh, gate-padded, f32
                      h0_ref,     # [Bb, Hp]       initial hidden state, f32
                      c0_ref,     # [Bb, Hp]       initial cell state, f32
                      h_out_ref,  # [Bb, Hp]
                      c_out_ref,  # [Bb, Hp]
                      gx_ref,     # [Tc*Bb, 4*Hp]  f32 scratch (per-chunk)
                      h_sc,       # [Bb, Hp]       f32 carry across chunks
                      c_sc,       # [Bb, Hp]       f32 carry across chunks
                      *, time_chunk, hp):
    bb = h_out_ref.shape[0]
    fa = x_ref.shape[-1]

    # Load the carried state at the first time-chunk of this batch shard.
    @pl.when(pl.program_id(1) == 0)
    def _():
        h_sc[...] = h0_ref[...]
        c_sc[...] = c0_ref[...]

    # ---- Chunk prologue: every x-dependent gate term of this chunk in ONE
    # GEMM.  The attention context (row-sum of x_t; softmax over the single
    # energy column == 1.0 exactly) is already an extra contraction row.
    wih = wih_ref[...]
    x_blk = x_ref[...].reshape(time_chunk * bb, fa)          # layout-preserving
    gx_ref[...] = (
        jnp.dot(x_blk.astype(wih.dtype), wih,
                preferred_element_type=jnp.float32)
        + b_ref[...])

    # ---- Serial recurrence over this chunk: only h @ W_hh plus the gate
    # nonlinearities sit on the critical path.  Gate blocks are lane-aligned
    # (Hp multiple of 128), so the four slices are whole-vreg selects.
    def step(t, carry):
        h_prev, c_prev = carry
        row0 = pl.multiple_of(t * bb, bb)
        whh = whh_ref[...]   # read per step; stays VMEM resident for large H
        gates = gx_ref[pl.ds(row0, bb), :] + jnp.dot(
            h_prev.astype(whh.dtype), whh,
            preferred_element_type=jnp.float32)
        i_g = jax.nn.sigmoid(gates[:, 0 * hp:1 * hp])
        f_g = jax.nn.sigmoid(gates[:, 1 * hp:2 * hp])
        g_g = jnp.tanh(gates[:, 2 * hp:3 * hp])
        o_g = jax.nn.sigmoid(gates[:, 3 * hp:4 * hp])
        c_t = f_g * c_prev + i_g * g_g
        h_t = o_g * jnp.tanh(c_t)
        return h_t, c_t

    h_t, c_t = jax.lax.fori_loop(0, time_chunk, step, (h_sc[...], c_sc[...]),
                                 unroll=True)   # unroll bounded by time_chunk
    h_sc[...] = h_t
    c_sc[...] = c_t
    # Output block index is chunk-invariant -> stays VMEM resident; HBM
    # writeback happens once per batch shard.  [Bb, Hp] is lane-dense.
    h_out_ref[...] = h_t
    c_out_ref[...] = c_t


def _pad_gate_cols(w, h, hp):
    """[..., 4*h] -> [..., 4*hp]: zero-pad each of the 4 gate blocks to hp lanes."""
    if hp == h:
        return w
    lead = w.shape[:-1]
    w4 = w.reshape(lead + (4, h))
    w4 = jnp.pad(w4, [(0, 0)] * len(lead) + [(0, 0), (0, hp - h)])
    return w4.reshape(lead + (4 * hp,))


def attention_lstm(x, params, init_states=None, *, time_chunk=None,
                   batch_shards=1, compute_dtype=jnp.float32):
    """x: [L, B, F] float32; returns (h_T, c_T), each [B, H] float32."""
    L, B, F = x.shape
    H = params["whh"].shape[0]

    # The kernel exploits softmax over the single energy column == 1.0
    # (so context == sum_f x_t[:, f]).  Guard that assumption explicitly.
    assert params["vw"].shape[-1] == 1 and params["vb"].shape[-1] == 1, (
        "attention must produce a single energy column for the softmax==1 "
        "identity the kernel relies on")

    assert B % batch_shards == 0, "batch_shards must divide B"
    bb = B // batch_shards              # for v7x set batch_shards=2 (B >= 16)
    hp = ((H + 127) // 128) * 128       # lane-align each gate block
    if time_chunk is None:
        time_chunk = next(t for t in (4, 8, 2, 1) if L % t == 0)
    assert L % time_chunk == 0
    num_chunks = L // time_chunk
    fa = F + 1

    # Fold the (numerically dead) attention context into the input GEMM as one
    # extra contraction row:  [x_t, sum_f x_t] @ [[W_ih_x], [w_ih_ctx]].
    ctx = jnp.sum(x, axis=-1, keepdims=True)
    x_aug = jnp.concatenate([x, ctx], axis=-1)                        # [L,B,F+1]

    wih = jnp.concatenate([params["wih_x"], params["wih_c"]], axis=0)  # [F+1,4H]
    bias = params["bih"] + params["bhh"]                               # [1, 4H]
    whh = jnp.pad(params["whh"], ((0, hp - H), (0, 0)))                # [Hp,4H]

    wih_p = _pad_gate_cols(wih, H, hp).astype(compute_dtype)
    whh_p = _pad_gate_cols(whh, H, hp).astype(compute_dtype)
    bias_p = _pad_gate_cols(bias, H, hp).astype(jnp.float32)

    if init_states is None:
        h0 = jnp.zeros((B, hp), jnp.float32)
        c0 = jnp.zeros((B, hp), jnp.float32)
    else:
        h0 = jnp.pad(init_states[0].astype(jnp.float32), ((0, 0), (0, hp - H)))
        c0 = jnp.pad(init_states[1].astype(jnp.float32), ((0, 0), (0, hp - H)))

    kernel = functools.partial(_attn_lstm_kernel, time_chunk=time_chunk, hp=hp)

    h_pad, c_pad = pl.pallas_call(
        kernel,
        grid=(batch_shards, num_chunks),
        in_specs=[
            pl.BlockSpec((time_chunk, bb, fa), lambda bs, c: (c, bs, 0)),
            pl.BlockSpec((fa, 4 * hp), lambda bs, c: (0, 0)),
            pl.BlockSpec((hp, 4 * hp), lambda bs, c: (0, 0)),
            pl.BlockSpec((1, 4 * hp), lambda bs, c: (0, 0)),
            pl.BlockSpec((bb, hp), lambda bs, c: (bs, 0)),
            pl.BlockSpec((bb, hp), lambda bs, c: (bs, 0)),
        ],
        out_specs=(
            pl.BlockSpec((bb, hp), lambda bs, c: (bs, 0)),
            pl.BlockSpec((bb, hp), lambda bs, c: (bs, 0)),
        ),
        out_shape=(jax.ShapeDtypeStruct((B, hp), jnp.float32),
                   jax.ShapeDtypeStruct((B, hp), jnp.float32)),
        scratch_shapes=[
            pltpu.VMEM((time_chunk * bb, 4 * hp), jnp.float32),
            pltpu.VMEM((bb, hp), jnp.float32),
            pltpu.VMEM((bb, hp), jnp.float32),
        ],
        compiler_params=pltpu.CompilerParams(
            dimension_semantics=("parallel", "arbitrary")),
    )(x_aug, wih_p, whh_p, bias_p, h0, c0)

    return h_pad[:, :H], c_pad[:, :H]


def attention_lstm_reference(x, params):
    """Pure-JAX reference mirroring the PyTorch forward exactly
    (including the numerically-dead attention branch)."""
    L, B, F = x.shape
    H = params["whh"].shape[0]
    with jax.default_matmul_precision("float32"):
        h = jnp.zeros((B, H), jnp.float32)
        c = jnp.zeros((B, H), jnp.float32)
        for t in range(L):
            x_t = x[t]
            query = h @ params["wq"] + params["bq"]
            keys = x_t @ params["wk"] + params["bk"]
            energy = jnp.tanh(query + keys) @ params["vw"] + params["vb"]   # [B,1]
            attn_w = jax.nn.softmax(energy, axis=1)                         # == 1.0
            context = jnp.sum(x_t * attn_w, axis=1, keepdims=True)          # [B,1]
            gates = (x_t @ params["wih_x"] + context * params["wih_c"]
                     + params["bih"] + h @ params["whh"] + params["bhh"])
            i_g = jax.nn.sigmoid(gates[:, 0 * H:1 * H])
            f_g = jax.nn.sigmoid(gates[:, 1 * H:2 * H])
            g_g = jnp.tanh(gates[:, 2 * H:3 * H])
            o_g = jax.nn.sigmoid(gates[:, 3 * H:4 * H])
            c = f_g * c + i_g * g_g
            h = o_g * jnp.tanh(c)
    return h, c


def init_params(key, input_size, hidden_size):
    F, H = input_size, hidden_size
    ks = jax.random.split(key, 12)
    s = 0.1
    n = lambda k, shape: (s * jax.random.normal(k, shape)).astype(jnp.float32)
    return {
        # Attention (kept for module fidelity; numerically dead in the forward)
        "wq": n(ks[0], (H, H)),     "bq": n(ks[1], (1, H)),
        "wk": n(ks[2], (F, H)),     "bk": n(ks[3], (1, H)),
        "vw": n(ks[4], (H, 1)),     "vb": n(ks[5], (1, 1)),
        # LSTMCell on cat([x_t, context])
        "wih_x": n(ks[6], (F, 4 * H)),   # W_ih columns for the x_t part
        "wih_c": n(ks[7], (1, 4 * H)),   # W_ih column for the context scalar
        "bih": n(ks[8], (1, 4 * H)),
        "whh": n(ks[9], (H, 4 * H)),
        "bhh": n(ks[10], (1, 4 * H)),
    }


if __name__ == "__main__":
    L, B, F, H = 8, 8, 16, 32

    key = jax.random.PRNGKey(0)
    kx, kp = jax.random.split(key)
    x = jax.random.normal(kx, (L, B, F), dtype=jnp.float32)
    params = init_params(kp, F, H)

    # f32 path (exact module semantics)
    h_t, c_t = attention_lstm(x, params)
    h_t, c_t = jax.block_until_ready((h_t, c_t))

    h_ref, c_ref = attention_lstm_reference(x, params)
    assert h_t.shape == (B, H) and c_t.shape == (B, H)
    assert jnp.allclose(h_t, h_ref, atol=1e-3, rtol=1e-3), \
        float(jnp.max(jnp.abs(h_t - h_ref)))
    assert jnp.allclose(c_t, c_ref, atol=1e-3, rtol=1e-3), \
        float(jnp.max(jnp.abs(c_t - c_ref)))

    # bf16 MXU path (weights on the MXU in bf16, f32 accumulation / state)
    h_bf, c_bf = attention_lstm(x, params, compute_dtype=jnp.bfloat16)
    h_bf, c_bf = jax.block_until_ready((h_bf, c_bf))
    assert jnp.allclose(h_bf, h_ref, atol=5e-2, rtol=5e-2), \
        float(jnp.max(jnp.abs(h_bf - h_ref)))
    assert jnp.allclose(c_bf, c_ref, atol=5e-2, rtol=5e-2), \
        float(jnp.max(jnp.abs(c_bf - c_ref)))

    # TODO(synk): batch_shards=2 (v7x dual-TensorCore split) needs B >= 16 so
    # each shard keeps >= 8 sublanes; not exercised at this demo batch size.
    print("KERNEL_OK")
</pallas_src>

<mosaic_0001>
module attributes {stable_mosaic.version = 11 : i64} {
  func.func @_attn_lstm_kernel(%arg0: i32, %arg1: i32, %arg2: memref<4x8x17xf32, #tpu.memory_space<vmem>>, %arg3: memref<17x512xf32, #tpu.memory_space<vmem>>, %arg4: memref<128x512xf32, #tpu.memory_space<vmem>>, %arg5: memref<1x512xf32, #tpu.memory_space<vmem>>, %arg6: memref<8x128xf32, #tpu.memory_space<vmem>>, %arg7: memref<8x128xf32, #tpu.memory_space<vmem>>, %arg8: memref<8x128xf32, #tpu.memory_space<vmem>>, %arg9: memref<8x128xf32, #tpu.memory_space<vmem>>, %arg10: memref<32x512xf32, #tpu.memory_space<vmem>>, %arg11: memref<8x128xf32, #tpu.memory_space<vmem>>, %arg12: memref<8x128xf32, #tpu.memory_space<vmem>>) attributes {dimension_semantics = [#tpu.dimension_semantics<parallel>, #tpu.dimension_semantics<arbitrary>], iteration_bounds = array<i64: 1, 2>, scalar_prefetch = 0 : i64, scratch_operands = 3 : i64, tpu.core_type = #tpu.core_type<tc>, window_params = [{transform_indices = @transform_0, window_bounds = array<i64: 4, 8, 17>}, {pipeline_mode = #tpu.pipeline_mode<synchronous>, transform_indices = @transform_1, window_bounds = array<i64: 17, 512>}, {pipeline_mode = #tpu.pipeline_mode<synchronous>, transform_indices = @transform_2, window_bounds = array<i64: 128, 512>}, {pipeline_mode = #tpu.pipeline_mode<synchronous>, transform_indices = @transform_3, window_bounds = array<i64: 1, 512>}, {transform_indices = @transform_4, window_bounds = array<i64: 8, 128>}, {transform_indices = @transform_5, window_bounds = array<i64: 8, 128>}, {transform_indices = @transform_6, window_bounds = array<i64: 8, 128>}, {transform_indices = @transform_7, window_bounds = array<i64: 8, 128>}]} {
    %c0_i32 = arith.constant 0 : i32
    %0 = arith.cmpi eq, %arg1, %c0_i32 : i32
    %1 = arith.extui %0 : i1 to i32
    %c0_i32_0 = arith.constant 0 : i32
    %2 = arith.cmpi ne, %1, %c0_i32_0 : i32
    scf.if %2 {
      %c0_53 = arith.constant 0 : index
      %c0_54 = arith.constant 0 : index
      %145 = vector.load %arg6[%c0_53, %c0_54] : memref<8x128xf32, #tpu.memory_space<vmem>>, vector<8x128xf32>
      %c0_55 = arith.constant 0 : index
      %c0_56 = arith.constant 0 : index
      %146 = vector.load %arg11[%c0_55, %c0_56] : memref<8x128xf32, #tpu.memory_space<vmem>>, vector<8x128xf32>
      tpu.vector_store %arg11[%c0_55, %c0_56], %145 {strides = array<i32>} : memref<8x128xf32, #tpu.memory_space<vmem>>, vector<8x128xf32>,
      %c0_57 = arith.constant 0 : index
      %c0_58 = arith.constant 0 : index
      %147 = vector.load %arg7[%c0_57, %c0_58] : memref<8x128xf32, #tpu.memory_space<vmem>>, vector<8x128xf32>
      %c0_59 = arith.constant 0 : index
      %c0_60 = arith.constant 0 : index
      %148 = vector.load %arg12[%c0_59, %c0_60] : memref<8x128xf32, #tpu.memory_space<vmem>>, vector<8x128xf32>
      tpu.vector_store %arg12[%c0_59, %c0_60], %147 {strides = array<i32>} : memref<8x128xf32, #tpu.memory_space<vmem>>, vector<8x128xf32>,
    } else {
    }
    %c0 = arith.constant 0 : index
    %c0_1 = arith.constant 0 : index
    %3 = vector.load %arg3[%c0, %c0_1] : memref<17x512xf32, #tpu.memory_space<vmem>>, vector<17x512xf32>
    %c0_2 = arith.constant 0 : index
    %c0_3 = arith.constant 0 : index
    %c0_4 = arith.constant 0 : index
    %4 = vector.load %arg2[%c0_2, %c0_3, %c0_4] : memref<4x8x17xf32, #tpu.memory_space<vmem>>, vector<4x8x17xf32>
    %5 = vector.shape_cast %4 : vector<4x8x17xf32> to vector<32x17xf32>
    %cst = arith.constant dense<0.000000e+00> : vector<32x512xf32>
    %6 = tpu.matmul %5, %3, %cst {dimension_numbers = #tpu.dot_dimension_numbers<[1], [0], [0], [1], [0, 0, 1, 1], [], []>} : vector<32x17xf32>, vector<17x512xf32>, vector<32x512xf32> -> vector<32x512xf32>
    %c0_5 = arith.constant 0 : index
    %c0_6 = arith.constant 0 : index
    %7 = vector.load %arg5[%c0_5, %c0_6] : memref<1x512xf32, #tpu.memory_space<vmem>>, vector<1x512xf32>
    %8 = vector.broadcast %7 : vector<1x512xf32> to vector<32x512xf32>
    %9 = arith.addf %6, %8 : vector<32x512xf32>
    %c0_7 = arith.constant 0 : index
    %c0_8 = arith.constant 0 : index
    %10 = vector.load %arg10[%c0_7, %c0_8] : memref<32x512xf32, #tpu.memory_space<vmem>>, vector<32x512xf32>
    tpu.vector_store %arg10[%c0_7, %c0_8], %9 {strides = array<i32>} : memref<32x512xf32, #tpu.memory_space<vmem>>, vector<32x512xf32>,
    %c0_9 = arith.constant 0 : index
    %c0_10 = arith.constant 0 : index
    %11 = vector.load %arg11[%c0_9, %c0_10] : memref<8x128xf32, #tpu.memory_space<vmem>>, vector<8x128xf32>
    %c0_11 = arith.constant 0 : index
    %c0_12 = arith.constant 0 : index
    %12 = vector.load %arg12[%c0_11, %c0_12] : memref<8x128xf32, #tpu.memory_space<vmem>>, vector<8x128xf32>
    %c0_i32_13 = arith.constant 0 : i32
    %c8_i32 = arith.constant 8 : i32
    %13 = arith.muli %c0_i32_13, %c8_i32 : i32
    %14 = tpu.assume_multiple %13, 8 : i32
    %c0_14 = arith.constant 0 : index
    %c0_15 = arith.constant 0 : index
    %15 = vector.load %arg4[%c0_14, %c0_15] : memref<128x512xf32, #tpu.memory_space<vmem>>, vector<128x512xf32>
    %16 = arith.index_cast %14 : i32 to index
    %c0_16 = arith.constant 0 : index
    %17 = vector.load %arg10[%16, %c0_16] : memref<32x512xf32, #tpu.memory_space<vmem>>, vector<8x512xf32>
    %cst_17 = arith.constant dense<0.000000e+00> : vector<8x512xf32>
    %18 = tpu.matmul %11, %15, %cst_17 {dimension_numbers = #tpu.dot_dimension_numbers<[1], [0], [0], [1], [0, 0, 1, 1], [], []>} : vector<8x128xf32>, vector<128x512xf32>, vector<8x512xf32> -> vector<8x512xf32>
    %19 = arith.addf %17, %18 : vector<8x512xf32>
    %20 = vector.extract_strided_slice %19 {offsets = [0, 0], sizes = [8, 128], strides = [1, 1]} : vector<8x512xf32> to vector<8x128xf32>
    %21 = arith.negf %20 : vector<8x128xf32>
    %22 = math.exp %21 : vector<8x128xf32>
    %cst_18 = arith.constant 1.000000e+00 : f32
    %23 = vector.broadcast %cst_18 : f32 to vector<8x128xf32>
    %24 = arith.addf %23, %22 : vector<8x128xf32>
    %25 = arith.divf %23, %24 : vector<8x128xf32>
    %26 = vector.extract_strided_slice %19 {offsets = [0, 128], sizes = [8, 128], strides = [1, 1]} : vector<8x512xf32> to vector<8x128xf32>
    %27 = arith.negf %26 : vector<8x128xf32>
    %28 = math.exp %27 : vector<8x128xf32>
    %cst_19 = arith.constant 1.000000e+00 : f32
    %29 = vector.broadcast %cst_19 : f32 to vector<8x128xf32>
    %30 = arith.addf %29, %28 : vector<8x128xf32>
    %31 = arith.divf %29, %30 : vector<8x128xf32>
    %32 = vector.extract_strided_slice %19 {offsets = [0, 256], sizes = [8, 128], strides = [1, 1]} : vector<8x512xf32> to vector<8x128xf32>
    %33 = math.tanh %32 : vector<8x128xf32>
    %34 = vector.extract_strided_slice %19 {offsets = [0, 384], sizes = [8, 128], strides = [1, 1]} : vector<8x512xf32> to vector<8x128xf32>
    %35 = arith.negf %34 : vector<8x128xf32>
    %36 = math.exp %35 : vector<8x128xf32>
    %cst_20 = arith.constant 1.000000e+00 : f32
    %37 = vector.broadcast %cst_20 : f32 to vector<8x128xf32>
    %38 = arith.addf %37, %36 : vector<8x128xf32>
    %39 = arith.divf %37, %38 : vector<8x128xf32>
    %40 = arith.mulf %31, %12 : vector<8x128xf32>
    %41 = arith.mulf %25, %33 : vector<8x128xf32>
    %42 = arith.addf %40, %41 : vector<8x128xf32>
    %43 = math.tanh %42 : vector<8x128xf32>
    %44 = arith.mulf %39, %43 : vector<8x128xf32>
    %c1_i32 = arith.constant 1 : i32
    %c8_i32_21 = arith.constant 8 : i32
    %45 = arith.muli %c1_i32, %c8_i32_21 : i32
    %46 = tpu.assume_multiple %45, 8 : i32
    %c0_22 = arith.constant 0 : index
    %c0_23 = arith.constant 0 : index
    %47 = vector.load %arg4[%c0_22, %c0_23] : memref<128x512xf32, #tpu.memory_space<vmem>>, vector<128x512xf32>
    %48 = arith.index_cast %46 : i32 to index
    %c0_24 = arith.constant 0 : index
    %49 = vector.load %arg10[%48, %c0_24] : memref<32x512xf32, #tpu.memory_space<vmem>>, vector<8x512xf32>
    %cst_25 = arith.constant dense<0.000000e+00> : vector<8x512xf32>
    %50 = tpu.matmul %44, %47, %cst_25 {dimension_numbers = #tpu.dot_dimension_numbers<[1], [0], [0], [1], [0, 0, 1, 1], [], []>} : vector<8x128xf32>, vector<128x512xf32>, vector<8x512xf32> -> vector<8x512xf32>
    %51 = arith.addf %49, %50 : vector<8x512xf32>
    %52 = vector.extract_strided_slice %51 {offsets = [0, 0], sizes = [8, 128], strides = [1, 1]} : vector<8x512xf32> to vector<8x128xf32>
    %53 = arith.negf %52 : vector<8x128xf32>
    %54 = math.exp %53 : vector<8x128xf32>
    %cst_26 = arith.constant 1.000000e+00 : f32
    %55 = vector.broadcast %cst_26 : f32 to vector<8x128xf32>
    %56 = arith.addf %55, %54 : vector<8x128xf32>
    %57 = arith.divf %55, %56 : vector<8x128xf32>
    %58 = vector.extract_strided_slice %51 {offsets = [0, 128], sizes = [8, 128], strides = [1, 1]} : vector<8x512xf32> to vector<8x128xf32>
    %59 = arith.negf %58 : vector<8x128xf32>
    %60 = math.exp %59 : vector<8x128xf32>
    %cst_27 = arith.constant 1.000000e+00 : f32
    %61 = vector.broadcast %cst_27 : f32 to vector<8x128xf32>
    %62 = arith.addf %61, %60 : vector<8x128xf32>
    %63 = arith.divf %61, %62 : vector<8x128xf32>
    %64 = vector.extract_strided_slice %51 {offsets = [0, 256], sizes = [8, 128], strides = [1, 1]} : vector<8x512xf32> to vector<8x128xf32>
    %65 = math.tanh %64 : vector<8x128xf32>
    %66 = vector.extract_strided_slice %51 {offsets = [0, 384], sizes = [8, 128], strides = [1, 1]} : vector<8x512xf32> to vector<8x128xf32>
    %67 = arith.negf %66 : vector<8x128xf32>
    %68 = math.exp %67 : vector<8x128xf32>
    %cst_28 = arith.constant 1.000000e+00 : f32
    %69 = vector.broadcast %cst_28 : f32 to vector<8x128xf32>
    %70 = arith.addf %69, %68 : vector<8x128xf32>
    %71 = arith.divf %69, %70 : vector<8x128xf32>
    %72 = arith.mulf %63, %42 : vector<8x128xf32>
    %73 = arith.mulf %57, %65 : vector<8x128xf32>
    %74 = arith.addf %72, %73 : vector<8x128xf32>
    %75 = math.tanh %74 : vector<8x128xf32>
    %76 = arith.mulf %71, %75 : vector<8x128xf32>
    %c2_i32 = arith.constant 2 : i32
    %c8_i32_29 = arith.constant 8 : i32
    %77 = arith.muli %c2_i32, %c8_i32_29 : i32
    %78 = tpu.assume_multiple %77, 8 : i32
    %c0_30 = arith.constant 0 : index
    %c0_31 = arith.constant 0 : index
    %79 = vector.load %arg4[%c0_30, %c0_31] : memref<128x512xf32, #tpu.memory_space<vmem>>, vector<128x512xf32>
    %80 = arith.index_cast %78 : i32 to index
    %c0_32 = arith.constant 0 : index
    %81 = vector.load %arg10[%80, %c0_32] : memref<32x512xf32, #tpu.memory_space<vmem>>, vector<8x512xf32>
    %cst_33 = arith.constant dense<0.000000e+00> : vector<8x512xf32>
    %82 = tpu.matmul %76, %79, %cst_33 {dimension_numbers = #tpu.dot_dimension_numbers<[1], [0], [0], [1], [0, 0, 1, 1], [], []>} : vector<8x128xf32>, vector<128x512xf32>, vector<8x512xf32> -> vector<8x512xf32>
    %83 = arith.addf %81, %82 : vector<8x512xf32>
    %84 = vector.extract_strided_slice %83 {offsets = [0, 0], sizes = [8, 128], strides = [1, 1]} : vector<8x512xf32> to vector<8x128xf32>
    %85 = arith.negf %84 : vector<8x128xf32>
    %86 = math.exp %85 : vector<8x128xf32>
    %cst_34 = arith.constant 1.000000e+00 : f32
    %87 = vector.broadcast %cst_34 : f32 to vector<8x128xf32>
    %88 = arith.addf %87, %86 : vector<8x128xf32>
    %89 = arith.divf %87, %88 : vector<8x128xf32>
    %90 = vector.extract_strided_slice %83 {offsets = [0, 128], sizes = [8, 128], strides = [1, 1]} : vector<8x512xf32> to vector<8x128xf32>
    %91 = arith.negf %90 : vector<8x128xf32>
    %92 = math.exp %91 : vector<8x128xf32>
    %cst_35 = arith.constant 1.000000e+00 : f32
    %93 = vector.broadcast %cst_35 : f32 to vector<8x128xf32>
    %94 = arith.addf %93, %92 : vector<8x128xf32>
    %95 = arith.divf %93, %94 : vector<8x128xf32>
    %96 = vector.extract_strided_slice %83 {offsets = [0, 256], sizes = [8, 128], strides = [1, 1]} : vector<8x512xf32> to vector<8x128xf32>
    %97 = math.tanh %96 : vector<8x128xf32>
    %98 = vector.extract_strided_slice %83 {offsets = [0, 384], sizes = [8, 128], strides = [1, 1]} : vector<8x512xf32> to vector<8x128xf32>
    %99 = arith.negf %98 : vector<8x128xf32>
    %100 = math.exp %99 : vector<8x128xf32>
    %cst_36 = arith.constant 1.000000e+00 : f32
    %101 = vector.broadcast %cst_36 : f32 to vector<8x128xf32>
    %102 = arith.addf %101, %100 : vector<8x128xf32>
    %103 = arith.divf %101, %102 : vector<8x128xf32>
    %104 = arith.mulf %95, %74 : vector<8x128xf32>
    %105 = arith.mulf %89, %97 : vector<8x128xf32>
    %106 = arith.addf %104, %105 : vector<8x128xf32>
    %107 = math.tanh %106 : vector<8x128xf32>
    %108 = arith.mulf %103, %107 : vector<8x128xf32>
    %c3_i32 = arith.constant 3 : i32
    %c8_i32_37 = arith.constant 8 : i32
    %109 = arith.muli %c3_i32, %c8_i32_37 : i32
    %110 = tpu.assume_multiple %109, 8 : i32
    %c0_38 = arith.constant 0 : index
    %c0_39 = arith.constant 0 : index
    %111 = vector.load %arg4[%c0_38, %c0_39] : memref<128x512xf32, #tpu.memory_space<vmem>>, vector<128x512xf32>
    %112 = arith.index_cast %110 : i32 to index
    %c0_40 = arith.constant 0 : index
    %113 = vector.load %arg10[%112, %c0_40] : memref<32x512xf32, #tpu.memory_space<vmem>>, vector<8x512xf32>
    %cst_41 = arith.constant dense<0.000000e+00> : vector<8x512xf32>
    %114 = tpu.matmul %108, %111, %cst_41 {dimension_numbers = #tpu.dot_dimension_numbers<[1], [0], [0], [1], [0, 0, 1, 1], [], []>} : vector<8x128xf32>, vector<128x512xf32>, vector<8x512xf32> -> vector<8x512xf32>
    %115 = arith.addf %113, %114 : vector<8x512xf32>
    %116 = vector.extract_strided_slice %115 {offsets = [0, 0], sizes = [8, 128], strides = [1, 1]} : vector<8x512xf32> to vector<8x128xf32>
    %117 = arith.negf %116 : vector<8x128xf32>
    %118 = math.exp %117 : vector<8x128xf32>
    %cst_42 = arith.constant 1.000000e+00 : f32
    %119 = vector.broadcast %cst_42 : f32 to vector<8x128xf32>
    %120 = arith.addf %119, %118 : vector<8x128xf32>
    %121 = arith.divf %119, %120 : vector<8x128xf32>
    %122 = vector.extract_strided_slice %115 {offsets = [0, 128], sizes = [8, 128], strides = [1, 1]} : vector<8x512xf32> to vector<8x128xf32>
    %123 = arith.negf %122 : vector<8x128xf32>
    %124 = math.exp %123 : vector<8x128xf32>
    %cst_43 = arith.constant 1.000000e+00 : f32
    %125 = vector.broadcast %cst_43 : f32 to vector<8x128xf32>
    %126 = arith.addf %125, %124 : vector<8x128xf32>
    %127 = arith.divf %125, %126 : vector<8x128xf32>
    %128 = vector.extract_strided_slice %115 {offsets = [0, 256], sizes = [8, 128], strides = [1, 1]} : vector<8x512xf32> to vector<8x128xf32>
    %129 = math.tanh %128 : vector<8x128xf32>
    %130 = vector.extract_strided_slice %115 {offsets = [0, 384], sizes = [8, 128], strides = [1, 1]} : vector<8x512xf32> to vector<8x128xf32>
    %131 = arith.negf %130 : vector<8x128xf32>
    %132 = math.exp %131 : vector<8x128xf32>
    %cst_44 = arith.constant 1.000000e+00 : f32
    %133 = vector.broadcast %cst_44 : f32 to vector<8x128xf32>
    %134 = arith.addf %133, %132 : vector<8x128xf32>
    %135 = arith.divf %133, %134 : vector<8x128xf32>
    %136 = arith.mulf %127, %106 : vector<8x128xf32>
    %137 = arith.mulf %121, %129 : vector<8x128xf32>
    %138 = arith.addf %136, %137 : vector<8x128xf32>
    %139 = math.tanh %138 : vector<8x128xf32>
    %140 = arith.mulf %135, %139 : vector<8x128xf32>
    %c4_i32 = arith.constant 4 : i32
    %c0_45 = arith.constant 0 : index
    %c0_46 = arith.constant 0 : index
    %141 = vector.load %arg11[%c0_45, %c0_46] : memref<8x128xf32, #tpu.memory_space<vmem>>, vector<8x128xf32>
    tpu.vector_store %arg11[%c0_45, %c0_46], %140 {strides = array<i32>} : memref<8x128xf32, #tpu.memory_space<vmem>>, vector<8x128xf32>,
    %c0_47 = arith.constant 0 : index
    %c0_48 = arith.constant 0 : index
    %142 = vector.load %arg12[%c0_47, %c0_48] : memref<8x128xf32, #tpu.memory_space<vmem>>, vector<8x128xf32>
    tpu.vector_store %arg12[%c0_47, %c0_48], %138 {strides = array<i32>} : memref<8x128xf32, #tpu.memory_space<vmem>>, vector<8x128xf32>,
    %c0_49 = arith.constant 0 : index
    %c0_50 = arith.constant 0 : index
    %143 = vector.load %arg8[%c0_49, %c0_50] : memref<8x128xf32, #tpu.memory_space<vmem>>, vector<8x128xf32>
    tpu.vector_store %arg8[%c0_49, %c0_50], %140 {strides = array<i32>} : memref<8x128xf32, #tpu.memory_space<vmem>>, vector<8x128xf32>,
    %c0_51 = arith.constant 0 : index
    %c0_52 = arith.constant 0 : index
    %144 = vector.load %arg9[%c0_51, %c0_52] : memref<8x128xf32, #tpu.memory_space<vmem>>, vector<8x128xf32>
    tpu.vector_store %arg9[%c0_51, %c0_52], %138 {strides = array<i32>} : memref<8x128xf32, #tpu.memory_space<vmem>>, vector<8x128xf32>,
    return
  }
  func.func @transform_0(%arg0: i32, %arg1: i32) -> (i32, i32, i32) {
    %c0_i32 = arith.constant 0 : i32
    %c0_i32_0 = arith.constant 0 : i32
    return %arg1, %arg0, %c0_i32 : i32, i32, i32
  }
  func.func @transform_1(%arg0: i32, %arg1: i32) -> (i32, i32) {
    %c0_i32 = arith.constant 0 : i32
    %c0_i32_0 = arith.constant 0 : i32
    %c0_i32_1 = arith.constant 0 : i32
    return %c0_i32, %c0_i32_0 : i32, i32
  }
  func.func @transform_2(%arg0: i32, %arg1: i32) -> (i32, i32) {
    %c0_i32 = arith.constant 0 : i32
    %c0_i32_0 = arith.constant 0 : i32
    %c0_i32_1 = arith.constant 0 : i32
    return %c0_i32, %c0_i32_0 : i32, i32
  }
  func.func @transform_3(%arg0: i32, %arg1: i32) -> (i32, i32) {
    %c0_i32 = arith.constant 0 : i32
    %c0_i32_0 = arith.constant 0 : i32
    %c0_i32_1 = arith.constant 0 : i32
    return %c0_i32, %c0_i32_0 : i32, i32
  }
  func.func @transform_4(%arg0: i32, %arg1: i32) -> (i32, i32) {
    %c0_i32 = arith.constant 0 : i32
    %c0_i32_0 = arith.constant 0 : i32
    return %arg0, %c0_i32 : i32, i32
  }
  func.func @transform_5(%arg0: i32, %arg1: i32) -> (i32, i32) {
    %c0_i32 = arith.constant 0 : i32
    %c0_i32_0 = arith.constant 0 : i32
    return %arg0, %c0_i32 : i32, i32
  }
  func.func @transform_6(%arg0: i32, %arg1: i32) -> (i32, i32) {
    %c0_i32 = arith.constant 0 : i32
    %c0_i32_0 = arith.constant 0 : i32
    return %arg0, %c0_i32 : i32, i32
  }
  func.func @transform_7(%arg0: i32, %arg1: i32) -> (i32, i32) {
    %c0_i32 = arith.constant 0 : i32
    %c0_i32_0 = arith.constant 0 : i32
    return %arg0, %c0_i32 : i32, i32
  }
}

</mosaic_0001>

<llo_original>
// kernel: tpu_custom_call.1
$region0: #{tpu_custom_call.1}
  #allocation0 [shape = 'u32[]', space=smem, size = 0x4, offset = 0x4, fixed_abs, tag = 'smem constant byte address 0x4 - core index']
  #allocation1 [shape = 'u32[72,128]{1,0:T(1,128)}', space=vmem, size = 0x9000, scoped, tag = 'internal scratch']
  #allocation2 [shape = 'f32[32,512]{1,0:T(8,128)}', space=vmem, size = 0x10000, scoped, tag = 'scratch operand']
  #allocation3 [shape = 'f32[8,128]{1,0:T(8,128)}', space=vmem, size = 0x1000, scoped, tag = 'scratch operand']
  #allocation4 [shape = 'f32[8,128]{1,0:T(8,128)}', space=vmem, size = 0x1000, scoped, tag = 'scratch operand']
  %s0 = inlined_call_operand.hbm [shape: f32[8,8,17], index: 0, kind: input, shape index: {}]
  %s1 = inlined_call_operand.hbm [shape: f32[17,512], index: 1, kind: input, shape index: {}]
  %s2 = inlined_call_operand.hbm [shape: f32[128,512], index: 2, kind: input, shape index: {}]
  %s3 = inlined_call_operand.hbm [shape: f32[1,512], index: 3, kind: input, shape index: {}]
  %s4 = inlined_call_operand.hbm [shape: f32[8,128], index: 4, kind: input, shape index: {}]
  %s5 = inlined_call_operand.hbm [shape: f32[8,128], index: 5, kind: input, shape index: {}]
  %s6 = inlined_call_operand.hbm [shape: f32[8,128], index: 6, kind: output, shape index: {0}]
  %s7 = inlined_call_operand.hbm [shape: f32[8,128], index: 7, kind: output, shape index: {1}]
  %8 = xla_tuple %s6, %s7
  %s9 = sld [smem:[#allocation0]]
  $region93: #{tpu_custom_call.1} parent=0
    _
  %s11 = ssub.s32 1, %s9
  %s12 = scalar_select 0, %s11, %s9
  $region1: #{tpu_custom_call.1} parent=0
    #allocation5 [shape = 'u8[32768]{0}', space=vmem, size = 0x8000, scoped, tag = 'input window, operand 0']
    #allocation6 [shape = 's32[2]{0}', space=sflag, size = 0x8, scoped, tag = 'scoped memory for tpu_custom_call.1']
    #allocation7 [shape = 's32[2]{0}', space=sflag, size = 0x8, scoped, tag = 'scoped memory for tpu_custom_call.1']
    #allocation8 [shape = 'u8[49152]{0}', space=vmem, size = 0xc000, scoped, tag = 'input window, operand 1, single buffered']
    #allocation9 [shape = 's32[1]{0}', space=sflag, size = 0x4, scoped, tag = 'scoped memory for tpu_custom_call.1']
    #allocation10 [shape = 'u8[262144]{0}', space=vmem, size = 0x40000, scoped, tag = 'input window, operand 2, single buffered']
    #allocation11 [shape = 'u8[2048]{0}', space=vmem, size = 0x800, scoped, tag = 'input window, operand 3, single buffered']
    #allocation12 [shape = 's32[1]{0}', space=sflag, size = 0x4, scoped, tag = 'scoped memory for tpu_custom_call.1']
    #allocation13 [shape = 'u8[4096]{0}', space=vmem, size = 0x1000, scoped, tag = 'input window, operand 4, single buffered']
    #allocation14 [shape = 'u8[4096]{0}', space=vmem, size = 0x1000, scoped, tag = 'input window, operand 5, single buffered']
    #allocation15 [shape = 's32[1]{0}', space=sflag, size = 0x4, scoped, tag = 'scoped memory for tpu_custom_call.1']
    #allocation16 [shape = 'u8[4096]{0}', space=vmem, size = 0x1000, scoped, tag = 'output window, operand 0, single buffered']
    #allocation17 [shape = 'u8[4096]{0}', space=vmem, size = 0x1000, scoped, tag = 'output window, operand 1, single buffered']
    #allocation18 [shape = 's32[1]{0}', space=sflag, size = 0x4, scoped, tag = 'scoped memory for tpu_custom_call.1']
    %13 = vsyncpa [#allocation6], 0
    %s14 = scalar_lea.sflag [#allocation6], 1
    %15 = vsyncpa %s14, 0
    %16 = vsyncpa [#allocation9], 0
    %17 = vsyncpa [#allocation12], 0
    %18 = vsyncpa [#allocation15], 0
    %19 = vsyncpa [#allocation7], 0
    %20 = vsyncpa [#allocation18], 0
    loop: start=0, step=1, limit=4
    $region2: #{tpu_custom_call.1} parent=1 // loop_pre_header
      _
    $region3: #{tpu_custom_call.1} parent=1 // loop_header
      %s22 = sphi 0, %s26
      %p23 = scmp.ge.s32.totalorder %s22, 4
      %s29 = sphi 0, %s41
      %s30 = sphi 0, %s37
      %s31 = sphi 0, %s29
      %s32 = sphi 0, %s30
      %s33 = sphi 0, %s31
      %s34 = sphi 0, %s32
      %s46 = sphi 0, %s48
      %s49 = sphi 0, %s46
      %s50 = sphi 0, %s49
      %s66 = sphi 0, %s50
      %s70 = sphi 0, %s70
      %s72 = sphi 0, %s70
      %s73 = sphi 0, %s72
      %s87 = sphi 0, %s73
      %s91 = sphi 0, %s91
      %s93 = sphi 0, %s91
      %s94 = sphi 0, %s93
      %s108 = sphi 0, %s94
      %s112 = sphi 0, %s112
      %s114 = sphi 0, %s112
      %s115 = sphi 0, %s114
      %s129 = sphi 0, %s115
      %s135 = sphi 0, %s137
      %s138 = sphi 0, %s135
      %s139 = sphi 0, %s138
      %s155 = sphi 0, %s139
      %s161 = sphi 0, %s163
      %s164 = sphi 0, %s161
      %s165 = sphi 0, %s164
      %s181 = sphi 0, %s165
      %s187 = sphi 0, %s189
      %s190 = sphi 0, %s187
      %s191 = sphi 0, %s190
      %s207 = sphi 0, %s191
      %s213 = sphi 0, %s215
      %s216 = sphi 0, %s213
      %s217 = sphi 0, %s216
      %s233 = sphi 0, %s217
    $region4: #{tpu_custom_call.1} parent=1 // loop_header_branch
      %25 = sbr.rel (%p23) target = $region8
    $region5: #{tpu_custom_call.1} parent=1 // loop_body
      %s27 = ssub.s32 %s22, 1
      %s28 = ssub.s32 %s22, 2
      %s35 = sadd.s32 1, %s30
      %p36 = scmp.ge.s32.totalorder %s35, 2
      %s37 = scalar_select %p36, 0, %s35
      %s38 = sadd.s32 1, %s29
      %s39 = scalar_select %p36, %s38, %s29
      %p40 = scmp.ge.s32.totalorder %s39, 1
      %s41 = scalar_select %p40, 0, %s39
      %s42 = ssub.s32 %s30, %s37
      %s43 = ssub.s32 %s29, %s41
      %s44 = sor.u32 %s42, %s43
      %p45 = scmp.eq.s32.totalorder %s44, 0
      %s47 = sadd.s32 %s46, 1
      %s48 = scalar_select %p45, %s46, %s47
      %p51 = pneg %p45
      %p52 = scmp.eq.s32.totalorder %s22, 1
      %p53 = por %p51, %p52
      %p54 = scmp.ne.s32.totalorder %s46, %s49
      %p55 = scmp.eq.s32.totalorder %s22, 0
      %p56 = por %p54, %p55
      %p57 = scmp.ne.s32.totalorder %s46, %s49
      %p58 = scmp.eq.s32.totalorder %s27, 1
      %p59 = por %p57, %p58
      %p60 = scmp.ne.s32.totalorder %s49, %s50
      %p61 = scmp.eq.s32.totalorder %s27, 0
      %p62 = por %p60, %p61
      %p63 = scmp.ne.s32.totalorder %s49, %s50
      %p64 = scmp.eq.s32.totalorder %s28, 1
      %p65 = por %p63, %p64
      %p67 = scmp.ne.s32.totalorder %s50, %s66
      %p68 = scmp.eq.s32.totalorder %s28, 0
      %p69 = por %p67, %p68
      %s71 = sadd.s32 %s70, 1
      %p74 = scmp.eq.s32.totalorder %s22, 1
      %p75 = scmp.ne.s32.totalorder %s70, %s72
      %p76 = scmp.eq.s32.totalorder %s22, 0
      %p77 = por %p75, %p76
      %p78 = scmp.ne.s32.totalorder %s70, %s72
      %p79 = scmp.eq.s32.totalorder %s27, 1
      %p80 = por %p78, %p79
      %p81 = scmp.ne.s32.totalorder %s72, %s73
      %p82 = scmp.eq.s32.totalorder %s27, 0
      %p83 = por %p81, %p82
      %p84 = scmp.ne.s32.totalorder %s72, %s73
      %p85 = scmp.eq.s32.totalorder %s28, 1
      %p86 = por %p84, %p85
      %p88 = scmp.ne.s32.totalorder %s73, %s87
      %p89 = scmp.eq.s32.totalorder %s28, 0
      %p90 = por %p88, %p89
      %s92 = sadd.s32 %s91, 1
      %p95 = scmp.eq.s32.totalorder %s22, 1
      %p96 = scmp.ne.s32.totalorder %s91, %s93
      %p97 = scmp.eq.s32.totalorder %s22, 0
      %p98 = por %p96, %p97
      %p99 = scmp.ne.s32.totalorder %s91, %s93
      %p100 = scmp.eq.s32.totalorder %s27, 1
      %p101 = por %p99, %p100
      %p102 = scmp.ne.s32.totalorder %s93, %s94
      %p103 = scmp.eq.s32.totalorder %s27, 0
      %p104 = por %p102, %p103
      %p105 = scmp.ne.s32.totalorder %s93, %s94
      %p106 = scmp.eq.s32.totalorder %s28, 1
      %p107 = por %p105, %p106
      %p109 = scmp.ne.s32.totalorder %s94, %s108
      %p110 = scmp.eq.s32.totalorder %s28, 0
      %p111 = por %p109, %p110
      %s113 = sadd.s32 %s112, 1
      %p116 = scmp.eq.s32.totalorder %s22, 1
      %p117 = scmp.ne.s32.totalorder %s112, %s114
      %p118 = scmp.eq.s32.totalorder %s22, 0
      %p119 = por %p117, %p118
      %p120 = scmp.ne.s32.totalorder %s112, %s114
      %p121 = scmp.eq.s32.totalorder %s27, 1
      %p122 = por %p120, %p121
      %p123 = scmp.ne.s32.totalorder %s114, %s115
      %p124 = scmp.eq.s32.totalorder %s27, 0
      %p125 = por %p123, %p124
      %p126 = scmp.ne.s32.totalorder %s114, %s115
      %p127 = scmp.eq.s32.totalorder %s28, 1
      %p128 = por %p126, %p127
      %p130 = scmp.ne.s32.totalorder %s115, %s129
      %p131 = scmp.eq.s32.totalorder %s28, 0
      %p132 = por %p130, %p131
      %s133 = ssub.s32 %s29, %s41
      %p134 = scmp.eq.s32.totalorder %s133, 0
      %s136 = sadd.s32 %s135, 1
      %s137 = scalar_select %p134, %s135, %s136
      %p140 = pneg %p134
      %p141 = scmp.eq.s32.totalorder %s22, 1
      %p142 = por %p140, %p141
      %p143 = scmp.ne.s32.totalorder %s135, %s138
      %p144 = scmp.eq.s32.totalorder %s22, 0
      %p145 = por %p143, %p144
      %p146 = scmp.ne.s32.totalorder %s135, %s138
      %p147 = scmp.eq.s32.totalorder %s27, 1
      %p148 = por %p146, %p147
      %p149 = scmp.ne.s32.totalorder %s138, %s139
      %p150 = scmp.eq.s32.totalorder %s27, 0
      %p151 = por %p149, %p150
      %p152 = scmp.ne.s32.totalorder %s138, %s139
      %p153 = scmp.eq.s32.totalorder %s28, 1
      %p154 = por %p152, %p153
      %p156 = scmp.ne.s32.totalorder %s139, %s155
      %p157 = scmp.eq.s32.totalorder %s28, 0
      %p158 = por %p156, %p157
      %s159 = ssub.s32 %s29, %s41
      %p160 = scmp.eq.s32.totalorder %s159, 0
      %s162 = sadd.s32 %s161, 1
      %s163 = scalar_select %p160, %s161, %s162
      %p166 = pneg %p160
      %p167 = scmp.eq.s32.totalorder %s22, 1
      %p168 = por %p166, %p167
      %p169 = scmp.ne.s32.totalorder %s161, %s164
      %p170 = scmp.eq.s32.totalorder %s22, 0
      %p171 = por %p169, %p170
      %p172 = scmp.ne.s32.totalorder %s161, %s164
      %p173 = scmp.eq.s32.totalorder %s27, 1
      %p174 = por %p172, %p173
      %p175 = scmp.ne.s32.totalorder %s164, %s165
      %p176 = scmp.eq.s32.totalorder %s27, 0
      %p177 = por %p175, %p176
      %p178 = scmp.ne.s32.totalorder %s164, %s165
      %p179 = scmp.eq.s32.totalorder %s28, 1
      %p180 = por %p178, %p179
      %p182 = scmp.ne.s32.totalorder %s165, %s181
      %p183 = scmp.eq.s32.totalorder %s28, 0
      %p184 = por %p182, %p183
      %s185 = ssub.s32 %s29, %s41
      %p186 = scmp.eq.s32.totalorder %s185, 0
      %s188 = sadd.s32 %s187, 1
      %s189 = scalar_select %p186, %s187, %s188
      %p192 = pneg %p186
      %p193 = scmp.eq.s32.totalorder %s22, 1
      %p194 = por %p192, %p193
      %p195 = scmp.ne.s32.totalorder %s187, %s190
      %p196 = scmp.eq.s32.totalorder %s22, 0
      %p197 = por %p195, %p196
      %p198 = scmp.ne.s32.totalorder %s187, %s190
      %p199 = scmp.eq.s32.totalorder %s27, 1
      %p200 = por %p198, %p199
      %p201 = scmp.ne.s32.totalorder %s190, %s191
      %p202 = scmp.eq.s32.totalorder %s27, 0
      %p203 = por %p201, %p202
      %p204 = scmp.ne.s32.totalorder %s190, %s191
      %p205 = scmp.eq.s32.totalorder %s28, 1
      %p206 = por %p204, %p205
      %p208 = scmp.ne.s32.totalorder %s191, %s207
      %p209 = scmp.eq.s32.totalorder %s28, 0
      %p210 = por %p208, %p209
      %s211 = ssub.s32 %s29, %s41
      %p212 = scmp.eq.s32.totalorder %s211, 0
      %s214 = sadd.s32 %s213, 1
      %s215 = scalar_select %p212, %s213, %s214
      %p218 = pneg %p212
      %p219 = scmp.eq.s32.totalorder %s22, 1
      %p220 = por %p218, %p219
      %p221 = scmp.ne.s32.totalorder %s213, %s216
      %p222 = scmp.eq.s32.totalorder %s22, 0
      %p223 = por %p221, %p222
      %p224 = scmp.ne.s32.totalorder %s213, %s216
      %p225 = scmp.eq.s32.totalorder %s27, 1
      %p226 = por %p224, %p225
      %p227 = scmp.ne.s32.totalorder %s216, %s217
      %p228 = scmp.eq.s32.totalorder %s27, 0
      %p229 = por %p227, %p228
      %p230 = scmp.ne.s32.totalorder %s216, %s217
      %p231 = scmp.eq.s32.totalorder %s28, 1
      %p232 = por %p230, %p231
      %p234 = scmp.ne.s32.totalorder %s217, %s233
      %p235 = scmp.eq.s32.totalorder %s28, 0
      %p236 = por %p234, %p235
      %p237 = scmp.le.s32.totalorder 1, %s22
      %p238 = scmp.lt.s32.totalorder %s22, 3
      %p239 = pnand %p237, %p238
      %p240 = pneg %p239
      // Predicated region
      $region9: #{tpu_custom_call.1} parent=5 // pred_check
        _
      $region10: #{tpu_custom_call.1} parent=5 // pred_check_branch
        %242 = sbr.rel (%p239) target = $region12
      $region11: #{tpu_custom_call.1} parent=5 // pred_region
        %s243 = ssub.s32 %s22, 1
        // Predicated region
        $region13: #{tpu_custom_call.1} parent=11 // pred_check
          %p244 = pneg %p83
        $region14: #{tpu_custom_call.1} parent=11 // pred_check_branch
          %246 = sbr.rel (%p244) target = $region16
        $region15: #{tpu_custom_call.1} parent=11 // pred_region
          %248 = vsyncadd [#allocation9], 0
          %s249 = sshll.u32 %s1, 4
          %s250 = int_to_ptr.hbm [resolvable:$true] %s249
          %s251 = sshll.u32 [#allocation8], 4
          %s252 = int_to_ptr.vmem [resolvable:$true] %s251
          %257 = dma.hbm_to_vmem [thread:$0]  %s250, 1536, %s252, [#allocation9], 512, 512, 32
        $region16: #{tpu_custom_call.1} parent=11 // pred_fallthru
          _
        // Predicated region
        $region17: #{tpu_custom_call.1} parent=11 // pred_check
          %p258 = pneg %p104
        $region18: #{tpu_custom_call.1} parent=11 // pred_check_branch
          %260 = sbr.rel (%p258) target = $region20
        $region19: #{tpu_custom_call.1} parent=11 // pred_region
          %262 = vsyncadd [#allocation9], 0
          %s263 = sshll.u32 %s2, 4
          %s264 = int_to_ptr.hbm [resolvable:$true] %s263
          %s265 = sshll.u32 [#allocation10], 4
          %s266 = int_to_ptr.vmem [resolvable:$true] %s265
          %271 = dma.hbm_to_vmem [thread:$0]  %s264, 8192, %s266, [#allocation9], 512, 512, 32
        $region20: #{tpu_custom_call.1} parent=11 // pred_fallthru
          _
        // Predicated region
        $region21: #{tpu_custom_call.1} parent=11 // pred_check
          %p272 = pneg %p125
        $region22: #{tpu_custom_call.1} parent=11 // pred_check_branch
          %274 = sbr.rel (%p272) target = $region24
        $region23: #{tpu_custom_call.1} parent=11 // pred_region
          %276 = vsyncadd [#allocation12], 0
          %s278 = sshll.u32 %s3, 4
          %s279 = int_to_ptr.hbm [resolvable:$true] %s278
          %s280 = sshll.u32 [#allocation11], 4
          %s281 = int_to_ptr.vmem [resolvable:$true] %s280
          %283 = dma.hbm_to_vmem [thread:$0]  %s279, 64, %s281, [#allocation12]
        $region24: #{tpu_custom_call.1} parent=11 // pred_fallthru
          _
        // Predicated region
        $region25: #{tpu_custom_call.1} parent=11 // pred_check
          %p284 = pneg %p151
        $region26: #{tpu_custom_call.1} parent=11 // pred_check_branch
          %286 = sbr.rel (%p284) target = $region28
        $region27: #{tpu_custom_call.1} parent=11 // pred_region
          %288 = vsyncadd [#allocation12], 0
          %s289 = smul.addr %s31, 8
          %s290 = scalar_lea.hbm %s4, %s289
          %s292 = sshll.u32 %s290, 4
          %s293 = int_to_ptr.hbm [resolvable:$true] %s292
          %s294 = sshll.u32 [#allocation13], 4
          %s295 = int_to_ptr.vmem [resolvable:$true] %s294
          %297 = dma.hbm_to_vmem [thread:$0]  %s293, 128, %s295, [#allocation12]
        $region28: #{tpu_custom_call.1} parent=11 // pred_fallthru
          _
        // Predicated region
        $region29: #{tpu_custom_call.1} parent=11 // pred_check
          %p298 = pneg %p177
        $region30: #{tpu_custom_call.1} parent=11 // pred_check_branch
          %300 = sbr.rel (%p298) target = $region32
        $region31: #{tpu_custom_call.1} parent=11 // pred_region
          %302 = vsyncadd [#allocation15], 0
          %s303 = smul.addr %s31, 8
          %s304 = scalar_lea.hbm %s5, %s303
          %s306 = sshll.u32 %s304, 4
          %s307 = int_to_ptr.hbm [resolvable:$true] %s306
          %s308 = sshll.u32 [#allocation14], 4
          %s309 = int_to_ptr.vmem [resolvable:$true] %s308
          %311 = dma.hbm_to_vmem [thread:$0]  %s307, 128, %s309, [#allocation15]
        $region32: #{tpu_custom_call.1} parent=11 // pred_fallthru
          _
      $region12: #{tpu_custom_call.1} parent=5 // pred_fallthru
        _
      %p312 = scmp.lt.s32.totalorder %s22, 2
      // Predicated region
      $region33: #{tpu_custom_call.1} parent=5 // pred_check
        %p313 = pneg %p312
      $region34: #{tpu_custom_call.1} parent=5 // pred_check_branch
        %315 = sbr.rel (%p313) target = $region36
      $region35: #{tpu_custom_call.1} parent=5 // pred_region
        // Predicated region
        $region37: #{tpu_custom_call.1} parent=35 // pred_check
          %p316 = pneg %p56
        $region38: #{tpu_custom_call.1} parent=35 // pred_check_branch
          %318 = sbr.rel (%p316) target = $region40
        $region39: #{tpu_custom_call.1} parent=35 // pred_region
          %s319 = sand.u32 %s46, 1
          %s320 = scalar_lea.sflag [#allocation6], %s319
          %s321 = sand.u32 %s46, 1
          %s322 = smul.addr %s321, 32
          %s323 = scalar_lea.vmem [#allocation5], %s322
          %s324 = smul.u32 4, %s30
          %326 = vsyncadd %s320, 0
          %s327 = sadd.s32 %s29, %s324
          %s328 = smul.addr %s327, 8
          %s329 = scalar_lea.hbm %s0, %s328
          %s330 = sshll.u32 %s329, 4
          %s331 = int_to_ptr.hbm [resolvable:$true] %s330
          %s332 = sshll.u32 %s323, 4
          %s333 = int_to_ptr.vmem [resolvable:$true] %s332
          %338 = dma.hbm_to_vmem [thread:$0]  %s331, 512, %s333, %s320, 128, 128, 8
        $region40: #{tpu_custom_call.1} parent=35 // pred_fallthru
          _
      $region36: #{tpu_custom_call.1} parent=5 // pred_fallthru
        _
      %p339 = scmp.le.s32.totalorder 1, %s22
      %p340 = scmp.lt.s32.totalorder %s22, 3
      %p341 = pnand %p339, %p340
      %p342 = pneg %p341
      // Predicated region
      $region41: #{tpu_custom_call.1} parent=5 // pred_check
        _
      $region42: #{tpu_custom_call.1} parent=5 // pred_check_branch
        %344 = sbr.rel (%p341) target = $region44
      $region43: #{tpu_custom_call.1} parent=5 // pred_region
        %s345 = ssub.s32 %s22, 1
        %s346 = sand.u32 %s49, 1
        %s347 = scalar_lea.sflag [#allocation6], %s346
        %s348 = sand.u32 %s49, 1
        %s349 = smul.addr %s348, 32
        %s350 = scalar_lea.vmem [#allocation5], %s349
        // Predicated region
        $region45: #{tpu_custom_call.1} parent=43 // pred_check
          %p351 = pneg %p62
        $region46: #{tpu_custom_call.1} parent=43 // pred_check_branch
          %353 = sbr.rel (%p351) target = $region48
        $region47: #{tpu_custom_call.1} parent=43 // pred_region
          %355 = dma.done %s347, 512
        $region48: #{tpu_custom_call.1} parent=43 // pred_fallthru
          _
        // Predicated region
        $region49: #{tpu_custom_call.1} parent=43 // pred_check
          %p356 = pneg %p83
        $region50: #{tpu_custom_call.1} parent=43 // pred_check_branch
          %358 = sbr.rel (%p356) target = $region52
        $region51: #{tpu_custom_call.1} parent=43 // pred_region
          %360 = dma.done [#allocation9], 1536
        $region52: #{tpu_custom_call.1} parent=43 // pred_fallthru
          _
        // Predicated region
        $region53: #{tpu_custom_call.1} parent=43 // pred_check
          %p361 = pneg %p104
        $region54: #{tpu_custom_call.1} parent=43 // pred_check_branch
          %363 = sbr.rel (%p361) target = $region56
        $region55: #{tpu_custom_call.1} parent=43 // pred_region
          %365 = dma.done [#allocation9], 8192
        $region56: #{tpu_custom_call.1} parent=43 // pred_fallthru
          _
        // Predicated region
        $region57: #{tpu_custom_call.1} parent=43 // pred_check
          %p366 = pneg %p125
        $region58: #{tpu_custom_call.1} parent=43 // pred_check_branch
          %368 = sbr.rel (%p366) target = $region60
        $region59: #{tpu_custom_call.1} parent=43 // pred_region
          %370 = dma.done [#allocation12], 64
        $region60: #{tpu_custom_call.1} parent=43 // pred_fallthru
          _
        // Predicated region
        $region61: #{tpu_custom_call.1} parent=43 // pred_check
          %p371 = pneg %p151
        $region62: #{tpu_custom_call.1} parent=43 // pred_check_branch
          %373 = sbr.rel (%p371) target = $region64
        $region63: #{tpu_custom_call.1} parent=43 // pred_region
          %375 = dma.done [#allocation12], 128
        $region64: #{tpu_custom_call.1} parent=43 // pred_fallthru
          _
        // Predicated region
        $region65: #{tpu_custom_call.1} parent=43 // pred_check
          %p376 = pneg %p177
        $region66: #{tpu_custom_call.1} parent=43 // pred_check_branch
          %378 = sbr.rel (%p376) target = $region68
        $region67: #{tpu_custom_call.1} parent=43 // pred_region
          %380 = dma.done [#allocation15], 128
        $region68: #{tpu_custom_call.1} parent=43 // pred_fallthru
          _
        %s381 = sand.u32 %s49, 1
        %s382 = scalar_lea.sflag [#allocation6], %s381
        %s383 = sand.u32 %s49, 1
        %s384 = smul.addr %s383, 32
        %s385 = scalar_lea.vmem [#allocation5], %s384
        %p386 = pneg %p62
        %p387 = pneg %p59
        %p388 = pneg %p83
        %p389 = pneg %p80
        %p390 = pneg %p104
        %p391 = pneg %p101
        %p392 = pneg %p125
        %p393 = pneg %p122
        %p394 = pneg %p151
        %p395 = pneg %p148
        %p396 = pneg %p177
        %p397 = pneg %p174
        %p398 = pneg %p203
        %p399 = pneg %p200
        %p400 = pneg %p229
        %p401 = pneg %p226
        %s402 = smul.u32 4, %s32
        %p403 = scmp.eq.s32.totalorder %s32, 0
        // Predicated region
        $region69: #{tpu_custom_call.1} parent=43 // pred_check
          %p404 = pneg %p403
        $region70: #{tpu_custom_call.1} parent=43 // pred_check_branch
          %406 = sbr.rel (%p404) target = $region72
        $region71: #{tpu_custom_call.1} parent=43 // pred_region
          %v407 = vld [vmem:[#allocation13] sm:$0xff]
          %408 = vst [vmem:[#allocation3] sm:$0xff] %v407
          %v409 = vld [vmem:[#allocation14] sm:$0xff]
          %410 = vst [vmem:[#allocation4] sm:$0xff] %v409
        $region72: #{tpu_custom_call.1} parent=43 // pred_fallthru
          _
        %v411 = vld [vmem:[#allocation8] sm:$0xff]
        %v412 = vld [vmem:[#allocation8 + $0x8] sm:$0xff]
        %v413 = vld [vmem:[#allocation8 + $0x10] sm:$0xff]
        %v414 = vld [vmem:[#allocation8 + $0x18] sm:$0xff]
        %v415 = vld [vmem:[#allocation8 + $0x20] sm:$0xff]
        %v416 = vld [vmem:[#allocation8 + $0x28] sm:$0xff]
        %v417 = vld [vmem:[#allocation8 + $0x30] sm:$0xff]
        %v418 = vld [vmem:[#allocation8 + $0x38] sm:$0xff]
        %v419 = vld [vmem:[#allocation8 + $0x40] sm:$0x1]
        %v420 = vld [vmem:[#allocation8 + $0x48] sm:$0x1]
        %v421 = vld [vmem:[#allocation8 + $0x50] sm:$0x1]
        %v422 = vld [vmem:[#allocation8 + $0x58] sm:$0x1]
        %v423 = vld [vmem:[%s350] sm:$0xff]
        %v424 = vld [vmem:[%s350 + $0x8] sm:$0xff]
        %v425 = vld [vmem:[%s350 + $0x10] sm:$0xff]
        %v426 = vld [vmem:[%s350 + $0x18] sm:$0xff]
        %v427 = vld [vmem:[#allocation11] sm:$0xf]
        %v429 = vperm.slane %v427, 0
        %v430 = vperm.slane %v427, 1
        %v431 = vperm.slane %v427, 2
        %v432 = vperm.slane %v427, 3
        %vm437 = vcmask 138240
        %v439 = vsel %vm437, %v423, 0
        %v442 = vsel %vm437, %v424, 0
        %v445 = vsel %vm437, %v425, 0
        %v448 = vsel %vm437, %v426, 0
        %vm450 = vcmask 1040384
        %v452 = vsel %vm450, %v419, 0
        %v455 = vsel %vm450, %v420, 0
        %v458 = vsel %vm450, %v421, 0
        %v461 = vsel %vm450, %v422, 0
        %463 = vmatpush.msra.mxu0 0.0
        %464 = vmatpush.msra.mxu0 0.0
        %465 = vmatpush.msra.mxu0 0.0
        %466 = vmatpush.msra.mxu0 0.0
        %467 = vmatpush.msra.mxu0 0.0
        %468 = vmatpush.msra.mxu0 0.0
        %469 = vmatpush.msra.mxu0 0.0
        %470 = vmatpush.msra.mxu0 0.0
        %471 = vmatpush.msra.mxu0 0.0
        %472 = vmatpush.msra.mxu0 0.0
        %473 = vmatpush.msra.mxu0 0.0
        %474 = vmatpush.msra.mxu0 0.0
        %475 = vmatpush.msra.mxu0 0.0
        %476 = vmatpush.msra.mxu0 %v452
        %477 = vmatpush.msra.mxu0 %v415
        %478 = vmatpush.msra.mxu0 %v411
        %479 = vmatmul.f32.gmra.mxu0 %v439
        %v480 = vpop.f32.mrf.mxu0
        %v481 = vadd.f32 %v429, %v480
        %482 = vmatmul.f32.gmra.mxu0 %v442
        %v483 = vpop.f32.mrf.mxu0
        %v484 = vadd.f32 %v429, %v483
        %485 = vmatmul.f32.gmra.mxu0 %v445
        %v486 = vpop.f32.mrf.mxu0
        %v487 = vadd.f32 %v429, %v486
        %488 = vmatmul.f32.gmra.mxu0 %v448
        %v489 = vpop.f32.mrf.mxu0
        %v490 = vadd.f32 %v429, %v489
        %491 = vdwg.mxu0
        %492 = vmatpush.msra.mxu0 0.0
        %493 = vmatpush.msra.mxu0 0.0
        %494 = vmatpush.msra.mxu0 0.0
        %495 = vmatpush.msra.mxu0 0.0
        %496 = vmatpush.msra.mxu0 0.0
        %497 = vmatpush.msra.mxu0 0.0
        %498 = vmatpush.msra.mxu0 0.0
        %499 = vmatpush.msra.mxu0 0.0
        %500 = vmatpush.msra.mxu0 0.0
        %501 = vmatpush.msra.mxu0 0.0
        %502 = vmatpush.msra.mxu0 0.0
        %503 = vmatpush.msra.mxu0 0.0
        %504 = vmatpush.msra.mxu0 0.0
        %505 = vmatpush.msra.mxu0 %v455
        %506 = vmatpush.msra.mxu0 %v416
        %507 = vmatpush.msra.mxu0 %v412
        %508 = vmatmul.f32.gmra.mxu0 %v439
        %v509 = vpop.f32.mrf.mxu0
        %v510 = vadd.f32 %v430, %v509
        %511 = vmatmul.f32.gmra.mxu0 %v442
        %v512 = vpop.f32.mrf.mxu0
        %v513 = vadd.f32 %v430, %v512
        %514 = vmatmul.f32.gmra.mxu0 %v445
        %v515 = vpop.f32.mrf.mxu0
        %v516 = vadd.f32 %v430, %v515
        %517 = vmatmul.f32.gmra.mxu0 %v448
        %v518 = vpop.f32.mrf.mxu0
        %v519 = vadd.f32 %v430, %v518
        %520 = vdwg.mxu0
        %521 = vmatpush.msra.mxu0 0.0
        %522 = vmatpush.msra.mxu0 0.0
        %523 = vmatpush.msra.mxu0 0.0
        %524 = vmatpush.msra.mxu0 0.0
        %525 = vmatpush.msra.mxu0 0.0
        %526 = vmatpush.msra.mxu0 0.0
        %527 = vmatpush.msra.mxu0 0.0
        %528 = vmatpush.msra.mxu0 0.0
        %529 = vmatpush.msra.mxu0 0.0
        %530 = vmatpush.msra.mxu0 0.0
        %531 = vmatpush.msra.mxu0 0.0
        %532 = vmatpush.msra.mxu0 0.0
        %533 = vmatpush.msra.mxu0 0.0
        %534 = vmatpush.msra.mxu0 %v458
        %535 = vmatpush.msra.mxu0 %v417
        %536 = vmatpush.msra.mxu0 %v413
        %537 = vmatmul.f32.gmra.mxu0 %v439
        %v538 = vpop.f32.mrf.mxu0
        %v539 = vadd.f32 %v431, %v538
        %540 = vmatmul.f32.gmra.mxu0 %v442
        %v541 = vpop.f32.mrf.mxu0
        %v542 = vadd.f32 %v431, %v541
        %543 = vmatmul.f32.gmra.mxu0 %v445
        %v544 = vpop.f32.mrf.mxu0
        %v545 = vadd.f32 %v431, %v544
        %546 = vmatmul.f32.gmra.mxu0 %v448
        %v547 = vpop.f32.mrf.mxu0
        %v548 = vadd.f32 %v431, %v547
        %549 = vdwg.mxu0
        %550 = vmatpush.msra.mxu0 0.0
        %551 = vmatpush.msra.mxu0 0.0
        %552 = vmatpush.msra.mxu0 0.0
        %553 = vmatpush.msra.mxu0 0.0
        %554 = vmatpush.msra.mxu0 0.0
        %555 = vmatpush.msra.mxu0 0.0
        %556 = vmatpush.msra.mxu0 0.0
        %557 = vmatpush.msra.mxu0 0.0
        %558 = vmatpush.msra.mxu0 0.0
        %559 = vmatpush.msra.mxu0 0.0
        %560 = vmatpush.msra.mxu0 0.0
        %561 = vmatpush.msra.mxu0 0.0
        %562 = vmatpush.msra.mxu0 0.0
        %563 = vmatpush.msra.mxu0 %v461
        %564 = vmatpush.msra.mxu0 %v418
        %565 = vmatpush.msra.mxu0 %v414
        %566 = vmatmul.f32.gmra.mxu0 %v439
        %v567 = vpop.f32.mrf.mxu0
        %v568 = vadd.f32 %v432, %v567
        %569 = vmatmul.f32.gmra.mxu0 %v442
        %v570 = vpop.f32.mrf.mxu0
        %v571 = vadd.f32 %v432, %v570
        %572 = vmatmul.f32.gmra.mxu0 %v445
        %v573 = vpop.f32.mrf.mxu0
        %v574 = vadd.f32 %v432, %v573
        %575 = vmatmul.f32.gmra.mxu0 %v448
        %v576 = vpop.f32.mrf.mxu0
        %v577 = vadd.f32 %v432, %v576
        %578 = vdwg.mxu0
        %579 = vst [vmem:[#allocation2] sm:$0xff] %v481
        %580 = vst [vmem:[#allocation2 + $0x8] sm:$0xff] %v510
        %581 = vst [vmem:[#allocation2 + $0x10] sm:$0xff] %v539
        %582 = vst [vmem:[#allocation2 + $0x18] sm:$0xff] %v568
        %583 = vst [vmem:[#allocation2 + $0x20] sm:$0xff] %v484
        %584 = vst [vmem:[#allocation2 + $0x28] sm:$0xff] %v513
        %585 = vst [vmem:[#allocation2 + $0x30] sm:$0xff] %v542
        %586 = vst [vmem:[#allocation2 + $0x38] sm:$0xff] %v571
        %587 = vst [vmem:[#allocation2 + $0x40] sm:$0xff] %v487
        %588 = vst [vmem:[#allocation2 + $0x48] sm:$0xff] %v516
        %589 = vst [vmem:[#allocation2 + $0x50] sm:$0xff] %v545
        %590 = vst [vmem:[#allocation2 + $0x58] sm:$0xff] %v574
        %591 = vst [vmem:[#allocation2 + $0x60] sm:$0xff] %v490
        %592 = vst [vmem:[#allocation2 + $0x68] sm:$0xff] %v519
        %593 = vst [vmem:[#allocation2 + $0x70] sm:$0xff] %v548
        %594 = vst [vmem:[#allocation2 + $0x78] sm:$0xff] %v577
        %v595 = vld [vmem:[#allocation3] sm:$0xff]
        %v596 = vld [vmem:[#allocation4] sm:$0xff]
        %v597 = vld [vmem:[#allocation10] sm:$0xff]
        %v598 = vld [vmem:[#allocation10 + $0x8] sm:$0xff]
        %v599 = vld [vmem:[#allocation10 + $0x10] sm:$0xff]
        %v600 = vld [vmem:[#allocation10 + $0x18] sm:$0xff]
        %v601 = vld [vmem:[#allocation10 + $0x20] sm:$0xff]
        %v602 = vld [vmem:[#allocation10 + $0x28] sm:$0xff]
        %v603 = vld [vmem:[#allocation10 + $0x30] sm:$0xff]
        %v604 = vld [vmem:[#allocation10 + $0x38] sm:$0xff]
        %v605 = vld [vmem:[#allocation10 + $0x40] sm:$0xff]
        %v606 = vld [vmem:[#allocation10 + $0x48] sm:$0xff]
        %v607 = vld [vmem:[#allocation10 + $0x50] sm:$0xff]
        %v608 = vld [vmem:[#allocation10 + $0x58] sm:$0xff]
        %v609 = vld [vmem:[#allocation10 + $0x60] sm:$0xff]
        %v610 = vld [vmem:[#allocation10 + $0x68] sm:$0xff]
        %v611 = vld [vmem:[#allocation10 + $0x70] sm:$0xff]
        %v612 = vld [vmem:[#allocation10 + $0x78] sm:$0xff]
        %v613 = vld [vmem:[#allocation10 + $0x80] sm:$0xff]
        %v614 = vld [vmem:[#allocation10 + $0x88] sm:$0xff]
        %v615 = vld [vmem:[#allocation10 + $0x90] sm:$0xff]
        %v616 = vld [vmem:[#allocation10 + $0x98] sm:$0xff]
        %v617 = vld [vmem:[#allocation10 + $0xa0] sm:$0xff]
        %v618 = vld [vmem:[#allocation10 + $0xa8] sm:$0xff]
        %v619 = vld [vmem:[#allocation10 + $0xb0] sm:$0xff]
        %v620 = vld [vmem:[#allocation10 + $0xb8] sm:$0xff]
        %v621 = vld [vmem:[#allocation10 + $0xc0] sm:$0xff]
        %v622 = vld [vmem:[#allocation10 + $0xc8] sm:$0xff]
        %v623 = vld [vmem:[#allocation10 + $0xd0] sm:$0xff]
        %v624 = vld [vmem:[#allocation10 + $0xd8] sm:$0xff]
        %v625 = vld [vmem:[#allocation10 + $0xe0] sm:$0xff]
        %v626 = vld [vmem:[#allocation10 + $0xe8] sm:$0xff]
        %v627 = vld [vmem:[#allocation10 + $0xf0] sm:$0xff]
        %v628 = vld [vmem:[#allocation10 + $0xf8] sm:$0xff]
        %v629 = vld [vmem:[#allocation10 + $0x100] sm:$0xff]
        %v630 = vld [vmem:[#allocation10 + $0x108] sm:$0xff]
        %v631 = vld [vmem:[#allocation10 + $0x110] sm:$0xff]
        %v632 = vld [vmem:[#allocation10 + $0x118] sm:$0xff]
        %v633 = vld [vmem:[#allocation10 + $0x120] sm:$0xff]
        %v634 = vld [vmem:[#allocation10 + $0x128] sm:$0xff]
        %v635 = vld [vmem:[#allocation10 + $0x130] sm:$0xff]
        %v636 = vld [vmem:[#allocation10 + $0x138] sm:$0xff]
        %v637 = vld [vmem:[#allocation10 + $0x140] sm:$0xff]
        %v638 = vld [vmem:[#allocation10 + $0x148] sm:$0xff]
        %v639 = vld [vmem:[#allocation10 + $0x150] sm:$0xff]
        %v640 = vld [vmem:[#allocation10 + $0x158] sm:$0xff]
        %v641 = vld [vmem:[#allocation10 + $0x160] sm:$0xff]
        %v642 = vld [vmem:[#allocation10 + $0x168] sm:$0xff]
        %v643 = vld [vmem:[#allocation10 + $0x170] sm:$0xff]
        %v644 = vld [vmem:[#allocation10 + $0x178] sm:$0xff]
        %v645 = vld [vmem:[#allocation10 + $0x180] sm:$0xff]
        %v646 = vld [vmem:[#allocation10 + $0x188] sm:$0xff]
        %v647 = vld [vmem:[#allocation10 + $0x190] sm:$0xff]
        %v648 = vld [vmem:[#allocation10 + $0x198] sm:$0xff]
        %v649 = vld [vmem:[#allocation10 + $0x1a0] sm:$0xff]
        %v650 = vld [vmem:[#allocation10 + $0x1a8] sm:$0xff]
        %v651 = vld [vmem:[#allocation10 + $0x1b0] sm:$0xff]
        %v652 = vld [vmem:[#allocation10 + $0x1b8] sm:$0xff]
        %v653 = vld [vmem:[#allocation10 + $0x1c0] sm:$0xff]
        %v654 = vld [vmem:[#allocation10 + $0x1c8] sm:$0xff]
        %v655 = vld [vmem:[#allocation10 + $0x1d0] sm:$0xff]
        %v656 = vld [vmem:[#allocation10 + $0x1d8] sm:$0xff]
        %v657 = vld [vmem:[#allocation10 + $0x1e0] sm:$0xff]
        %v658 = vld [vmem:[#allocation10 + $0x1e8] sm:$0xff]
        %v659 = vld [vmem:[#allocation10 + $0x1f0] sm:$0xff]
        %v660 = vld [vmem:[#allocation10 + $0x1f8] sm:$0xff]
        %s661 = smul.u32 0, 4
        %s662 = smul.addr %s661, 8
        %s663 = scalar_lea.vmem [#allocation2], %s662
        %v664 = vld [vmem:[%s663] sm:$0xff]
        %v665 = vld [vmem:[%s663 + $0x8] sm:$0xff]
        %v666 = vld [vmem:[%s663 + $0x10] sm:$0xff]
        %v667 = vld [vmem:[%s663 + $0x18] sm:$0xff]
        %668 = vmatpush.msra.mxu0 %v657
        %669 = vmatpush.msra.mxu0 %v653
        %670 = vmatpush.msra.mxu0 %v649
        %671 = vmatpush.msra.mxu0 %v645
        %672 = vmatpush.msra.mxu0 %v641
        %673 = vmatpush.msra.mxu0 %v637
        %674 = vmatpush.msra.mxu0 %v633
        %675 = vmatpush.msra.mxu0 %v629
        %676 = vmatpush.msra.mxu0 %v625
        %677 = vmatpush.msra.mxu0 %v621
        %678 = vmatpush.msra.mxu0 %v617
        %679 = vmatpush.msra.mxu0 %v613
        %680 = vmatpush.msra.mxu0 %v609
        %681 = vmatpush.msra.mxu0 %v605
        %682 = vmatpush.msra.mxu0 %v601
        %683 = vmatpush.msra.mxu0 %v597
        %684 = vmatmul.f32.gmra.mxu0 %v595
        %v685 = vpop.f32.mrf.mxu0
        %v686 = vadd.f32 0.0, %v685
        %687 = vdwg.mxu0
        %688 = vmatpush.msra.mxu0 %v658
        %689 = vmatpush.msra.mxu0 %v654
        %690 = vmatpush.msra.mxu0 %v650
        %691 = vmatpush.msra.mxu0 %v646
        %692 = vmatpush.msra.mxu0 %v642
        %693 = vmatpush.msra.mxu0 %v638
        %694 = vmatpush.msra.mxu0 %v634
        %695 = vmatpush.msra.mxu0 %v630
        %696 = vmatpush.msra.mxu0 %v626
        %697 = vmatpush.msra.mxu0 %v622
        %698 = vmatpush.msra.mxu0 %v618
        %699 = vmatpush.msra.mxu0 %v614
        %700 = vmatpush.msra.mxu0 %v610
        %701 = vmatpush.msra.mxu0 %v606
        %702 = vmatpush.msra.mxu0 %v602
        %703 = vmatpush.msra.mxu0 %v598
        %704 = vmatmul.f32.gmra.mxu0 %v595
        %v705 = vpop.f32.mrf.mxu0
        %v706 = vadd.f32 0.0, %v705
        %707 = vdwg.mxu0
        %708 = vmatpush.msra.mxu0 %v659
        %709 = vmatpush.msra.mxu0 %v655
        %710 = vmatpush.msra.mxu0 %v651
        %711 = vmatpush.msra.mxu0 %v647
        %712 = vmatpush.msra.mxu0 %v643
        %713 = vmatpush.msra.mxu0 %v639
        %714 = vmatpush.msra.mxu0 %v635
        %715 = vmatpush.msra.mxu0 %v631
        %716 = vmatpush.msra.mxu0 %v627
        %717 = vmatpush.msra.mxu0 %v623
        %718 = vmatpush.msra.mxu0 %v619
        %719 = vmatpush.msra.mxu0 %v615
        %720 = vmatpush.msra.mxu0 %v611
        %721 = vmatpush.msra.mxu0 %v607
        %722 = vmatpush.msra.mxu0 %v603
        %723 = vmatpush.msra.mxu0 %v599
        %724 = vmatmul.f32.gmra.mxu0 %v595
        %v725 = vpop.f32.mrf.mxu0
        %v726 = vadd.f32 0.0, %v725
        %727 = vdwg.mxu0
        %728 = vmatpush.msra.mxu0 %v660
        %729 = vmatpush.msra.mxu0 %v656
        %730 = vmatpush.msra.mxu0 %v652
        %731 = vmatpush.msra.mxu0 %v648
        %732 = vmatpush.msra.mxu0 %v644
        %733 = vmatpush.msra.mxu0 %v640
        %734 = vmatpush.msra.mxu0 %v636
        %735 = vmatpush.msra.mxu0 %v632
        %736 = vmatpush.msra.mxu0 %v628
        %737 = vmatpush.msra.mxu0 %v624
        %738 = vmatpush.msra.mxu0 %v620
        %739 = vmatpush.msra.mxu0 %v616
        %740 = vmatpush.msra.mxu0 %v612
        %741 = vmatpush.msra.mxu0 %v608
        %742 = vmatpush.msra.mxu0 %v604
        %743 = vmatpush.msra.mxu0 %v600
        %744 = vmatmul.f32.gmra.mxu0 %v595
        %v745 = vpop.f32.mrf.mxu0
        %v746 = vadd.f32 0.0, %v745
        %747 = vdwg.mxu0
        %v748 = vadd.f32 %v664, %v686
        %v749 = vadd.f32 %v665, %v706
        %v750 = vadd.f32 %v666, %v726
        %v751 = vadd.f32 %v667, %v746
        %v752 = vxor.u32 %v748, 2147483648
        %v753 = vmul.f32 %v752, 1.442695
        %v754 = vpow.pop %v753
        %v755 = vadd.f32 %v754, 1.0
        %v756 = vrcp.pop %v755
        %v757 = vmul.f32 %v755, %v756
        %v758 = vsub.f32 1.0, %v757
        %v759 = vmul.f32 %v756, %v758
        %v760 = vadd.f32 %v756, %v759
        %vm761 = vweird.f32 %v755
        %vm762 = vweird.f32 %v756
        %vm763 = vmor %vm761, %vm762
        %v764 = vsel %vm763, %v756, %v760
        %v765 = vand.u32 2147483647, %v755
        %vm766 = vcmp.eq.f32.partialorder %v765, 8.507059e+37
        %v767 = vand.u32 %v755, 2147483648
        %v768 = vor.u32 1.1754944e-38, %v767
        %v769 = vsel %vm766, %v768, %v764
        %v770 = vmul.f32 1.0, %v769
        %v771 = vxor.u32 %v749, 2147483648
        %v772 = vmul.f32 %v771, 1.442695
        %v773 = vpow.pop %v772
        %v774 = vadd.f32 %v773, 1.0
        %v775 = vrcp.pop %v774
        %v776 = vmul.f32 %v774, %v775
        %v777 = vsub.f32 1.0, %v776
        %v778 = vmul.f32 %v775, %v777
        %v779 = vadd.f32 %v775, %v778
        %vm780 = vweird.f32 %v774
        %vm781 = vweird.f32 %v775
        %vm782 = vmor %vm780, %vm781
        %v783 = vsel %vm782, %v775, %v779
        %v784 = vand.u32 2147483647, %v774
        %vm785 = vcmp.eq.f32.partialorder %v784, 8.507059e+37
        %v786 = vand.u32 %v774, 2147483648
        %v787 = vor.u32 1.1754944e-38, %v786
        %v788 = vsel %vm785, %v787, %v783
        %v789 = vmul.f32 1.0, %v788
        %v790 = vtanh.pop %v750
        %v791 = vxor.u32 %v751, 2147483648
        %v792 = vmul.f32 %v791, 1.442695
        %v793 = vpow.pop %v792
        %v794 = vadd.f32 %v793, 1.0
        %v795 = vrcp.pop %v794
        %v796 = vmul.f32 %v794, %v795
        %v797 = vsub.f32 1.0, %v796
        %v798 = vmul.f32 %v795, %v797
        %v799 = vadd.f32 %v795, %v798
        %vm800 = vweird.f32 %v794
        %vm801 = vweird.f32 %v795
        %vm802 = vmor %vm800, %vm801
        %v803 = vsel %vm802, %v795, %v799
        %v804 = vand.u32 2147483647, %v794
        %vm805 = vcmp.eq.f32.partialorder %v804, 8.507059e+37
        %v806 = vand.u32 %v794, 2147483648
        %v807 = vor.u32 1.1754944e-38, %v806
        %v808 = vsel %vm805, %v807, %v803
        %v809 = vmul.f32 1.0, %v808
        %v810 = vmul.f32 %v789, %v596
        %v811 = vmul.f32 %v770, %v790
        %v812 = vadd.f32 %v810, %v811
        %v813 = vtanh.pop %v812
        %v814 = vmul.f32 %v809, %v813
        %s815 = smul.u32 1, 4
        %s816 = smul.addr %s815, 8
        %s817 = scalar_lea.vmem [#allocation2], %s816
        %v818 = vld [vmem:[%s817] sm:$0xff]
        %v819 = vld [vmem:[%s817 + $0x8] sm:$0xff]
        %v820 = vld [vmem:[%s817 + $0x10] sm:$0xff]
        %v821 = vld [vmem:[%s817 + $0x18] sm:$0xff]
        %822 = vmatpush.msra.mxu0 %v657
        %823 = vmatpush.msra.mxu0 %v653
        %824 = vmatpush.msra.mxu0 %v649
        %825 = vmatpush.msra.mxu0 %v645
        %826 = vmatpush.msra.mxu0 %v641
        %827 = vmatpush.msra.mxu0 %v637
        %828 = vmatpush.msra.mxu0 %v633
        %829 = vmatpush.msra.mxu0 %v629
        %830 = vmatpush.msra.mxu0 %v625
        %831 = vmatpush.msra.mxu0 %v621
        %832 = vmatpush.msra.mxu0 %v617
        %833 = vmatpush.msra.mxu0 %v613
        %834 = vmatpush.msra.mxu0 %v609
        %835 = vmatpush.msra.mxu0 %v605
        %836 = vmatpush.msra.mxu0 %v601
        %837 = vmatpush.msra.mxu0 %v597
        %838 = vmatmul.f32.gmra.mxu0 %v814
        %v839 = vpop.f32.mrf.mxu0
        %v840 = vadd.f32 0.0, %v839
        %841 = vdwg.mxu0
        %842 = vmatpush.msra.mxu0 %v658
        %843 = vmatpush.msra.mxu0 %v654
        %844 = vmatpush.msra.mxu0 %v650
        %845 = vmatpush.msra.mxu0 %v646
        %846 = vmatpush.msra.mxu0 %v642
        %847 = vmatpush.msra.mxu0 %v638
        %848 = vmatpush.msra.mxu0 %v634
        %849 = vmatpush.msra.mxu0 %v630
        %850 = vmatpush.msra.mxu0 %v626
        %851 = vmatpush.msra.mxu0 %v622
        %852 = vmatpush.msra.mxu0 %v618
        %853 = vmatpush.msra.mxu0 %v614
        %854 = vmatpush.msra.mxu0 %v610
        %855 = vmatpush.msra.mxu0 %v606
        %856 = vmatpush.msra.mxu0 %v602
        %857 = vmatpush.msra.mxu0 %v598
        %858 = vmatmul.f32.gmra.mxu0 %v814
        %v859 = vpop.f32.mrf.mxu0
        %v860 = vadd.f32 0.0, %v859
        %861 = vdwg.mxu0
        %862 = vmatpush.msra.mxu0 %v659
        %863 = vmatpush.msra.mxu0 %v655
        %864 = vmatpush.msra.mxu0 %v651
        %865 = vmatpush.msra.mxu0 %v647
        %866 = vmatpush.msra.mxu0 %v643
        %867 = vmatpush.msra.mxu0 %v639
        %868 = vmatpush.msra.mxu0 %v635
        %869 = vmatpush.msra.mxu0 %v631
        %870 = vmatpush.msra.mxu0 %v627
        %871 = vmatpush.msra.mxu0 %v623
        %872 = vmatpush.msra.mxu0 %v619
        %873 = vmatpush.msra.mxu0 %v615
        %874 = vmatpush.msra.mxu0 %v611
        %875 = vmatpush.msra.mxu0 %v607
        %876 = vmatpush.msra.mxu0 %v603
        %877 = vmatpush.msra.mxu0 %v599
        %878 = vmatmul.f32.gmra.mxu0 %v814
        %v879 = vpop.f32.mrf.mxu0
        %v880 = vadd.f32 0.0, %v879
        %881 = vdwg.mxu0
        %882 = vmatpush.msra.mxu0 %v660
        %883 = vmatpush.msra.mxu0 %v656
        %884 = vmatpush.msra.mxu0 %v652
        %885 = vmatpush.msra.mxu0 %v648
        %886 = vmatpush.msra.mxu0 %v644
        %887 = vmatpush.msra.mxu0 %v640
        %888 = vmatpush.msra.mxu0 %v636
        %889 = vmatpush.msra.mxu0 %v632
        %890 = vmatpush.msra.mxu0 %v628
        %891 = vmatpush.msra.mxu0 %v624
        %892 = vmatpush.msra.mxu0 %v620
        %893 = vmatpush.msra.mxu0 %v616
        %894 = vmatpush.msra.mxu0 %v612
        %895 = vmatpush.msra.mxu0 %v608
        %896 = vmatpush.msra.mxu0 %v604
        %897 = vmatpush.msra.mxu0 %v600
        %898 = vmatmul.f32.gmra.mxu0 %v814
        %v899 = vpop.f32.mrf.mxu0
        %v900 = vadd.f32 0.0, %v899
        %901 = vdwg.mxu0
        %v902 = vadd.f32 %v818, %v840
        %v903 = vadd.f32 %v819, %v860
        %v904 = vadd.f32 %v820, %v880
        %v905 = vadd.f32 %v821, %v900
        %v906 = vxor.u32 %v902, 2147483648
        %v907 = vmul.f32 %v906, 1.442695
        %v908 = vpow.pop %v907
        %v909 = vadd.f32 %v908, 1.0
        %v910 = vrcp.pop %v909
        %v911 = vmul.f32 %v909, %v910
        %v912 = vsub.f32 1.0, %v911
        %v913 = vmul.f32 %v910, %v912
        %v914 = vadd.f32 %v910, %v913
        %vm915 = vweird.f32 %v909
        %vm916 = vweird.f32 %v910
        %vm917 = vmor %vm915, %vm916
        %v918 = vsel %vm917, %v910, %v914
        %v919 = vand.u32 2147483647, %v909
        %vm920 = vcmp.eq.f32.partialorder %v919, 8.507059e+37
        %v921 = vand.u32 %v909, 2147483648
        %v922 = vor.u32 1.1754944e-38, %v921
        %v923 = vsel %vm920, %v922, %v918
        %v924 = vmul.f32 1.0, %v923
        %v925 = vxor.u32 %v903, 2147483648
        %v926 = vmul.f32 %v925, 1.442695
        %v927 = vpow.pop %v926
        %v928 = vadd.f32 %v927, 1.0
        %v929 = vrcp.pop %v928
        %v930 = vmul.f32 %v928, %v929
        %v931 = vsub.f32 1.0, %v930
        %v932 = vmul.f32 %v929, %v931
        %v933 = vadd.f32 %v929, %v932
        %vm934 = vweird.f32 %v928
        %vm935 = vweird.f32 %v929
        %vm936 = vmor %vm934, %vm935
        %v937 = vsel %vm936, %v929, %v933
        %v938 = vand.u32 2147483647, %v928
        %vm939 = vcmp.eq.f32.partialorder %v938, 8.507059e+37
        %v940 = vand.u32 %v928, 2147483648
        %v941 = vor.u32 1.1754944e-38, %v940
        %v942 = vsel %vm939, %v941, %v937
        %v943 = vmul.f32 1.0, %v942
        %v944 = vtanh.pop %v904
        %v945 = vxor.u32 %v905, 2147483648
        %v946 = vmul.f32 %v945, 1.442695
        %v947 = vpow.pop %v946
        %v948 = vadd.f32 %v947, 1.0
        %v949 = vrcp.pop %v948
        %v950 = vmul.f32 %v948, %v949
        %v951 = vsub.f32 1.0, %v950
        %v952 = vmul.f32 %v949, %v951
        %v953 = vadd.f32 %v949, %v952
        %vm954 = vweird.f32 %v948
        %vm955 = vweird.f32 %v949
        %vm956 = vmor %vm954, %vm955
        %v957 = vsel %vm956, %v949, %v953
        %v958 = vand.u32 2147483647, %v948
        %vm959 = vcmp.eq.f32.partialorder %v958, 8.507059e+37
        %v960 = vand.u32 %v948, 2147483648
        %v961 = vor.u32 1.1754944e-38, %v960
        %v962 = vsel %vm959, %v961, %v957
        %v963 = vmul.f32 1.0, %v962
        %v964 = vmul.f32 %v943, %v812
        %v965 = vmul.f32 %v924, %v944
        %v966 = vadd.f32 %v964, %v965
        %v967 = vtanh.pop %v966
        %v968 = vmul.f32 %v963, %v967
        %s969 = smul.u32 2, 4
        %s970 = smul.addr %s969, 8
        %s971 = scalar_lea.vmem [#allocation2], %s970
        %v972 = vld [vmem:[%s971] sm:$0xff]
        %v973 = vld [vmem:[%s971 + $0x8] sm:$0xff]
        %v974 = vld [vmem:[%s971 + $0x10] sm:$0xff]
        %v975 = vld [vmem:[%s971 + $0x18] sm:$0xff]
        %976 = vmatpush.msra.mxu0 %v657
        %977 = vmatpush.msra.mxu0 %v653
        %978 = vmatpush.msra.mxu0 %v649
        %979 = vmatpush.msra.mxu0 %v645
        %980 = vmatpush.msra.mxu0 %v641
        %981 = vmatpush.msra.mxu0 %v637
        %982 = vmatpush.msra.mxu0 %v633
        %983 = vmatpush.msra.mxu0 %v629
        %984 = vmatpush.msra.mxu0 %v625
        %985 = vmatpush.msra.mxu0 %v621
        %986 = vmatpush.msra.mxu0 %v617
        %987 = vmatpush.msra.mxu0 %v613
        %988 = vmatpush.msra.mxu0 %v609
        %989 = vmatpush.msra.mxu0 %v605
        %990 = vmatpush.msra.mxu0 %v601
        %991 = vmatpush.msra.mxu0 %v597
        %992 = vmatmul.f32.gmra.mxu0 %v968
        %v993 = vpop.f32.mrf.mxu0
        %v994 = vadd.f32 0.0, %v993
        %995 = vdwg.mxu0
        %996 = vmatpush.msra.mxu0 %v658
        %997 = vmatpush.msra.mxu0 %v654
        %998 = vmatpush.msra.mxu0 %v650
        %999 = vmatpush.msra.mxu0 %v646
        %1000 = vmatpush.msra.mxu0 %v642
        %1001 = vmatpush.msra.mxu0 %v638
        %1002 = vmatpush.msra.mxu0 %v634
        %1003 = vmatpush.msra.mxu0 %v630
        %1004 = vmatpush.msra.mxu0 %v626
        %1005 = vmatpush.msra.mxu0 %v622
        %1006 = vmatpush.msra.mxu0 %v618
        %1007 = vmatpush.msra.mxu0 %v614
        %1008 = vmatpush.msra.mxu0 %v610
        %1009 = vmatpush.msra.mxu0 %v606
        %1010 = vmatpush.msra.mxu0 %v602
        %1011 = vmatpush.msra.mxu0 %v598
        %1012 = vmatmul.f32.gmra.mxu0 %v968
        %v1013 = vpop.f32.mrf.mxu0
        %v1014 = vadd.f32 0.0, %v1013
        %1015 = vdwg.mxu0
        %1016 = vmatpush.msra.mxu0 %v659
        %1017 = vmatpush.msra.mxu0 %v655
        %1018 = vmatpush.msra.mxu0 %v651
        %1019 = vmatpush.msra.mxu0 %v647
        %1020 = vmatpush.msra.mxu0 %v643
        %1021 = vmatpush.msra.mxu0 %v639
        %1022 = vmatpush.msra.mxu0 %v635
        %1023 = vmatpush.msra.mxu0 %v631
        %1024 = vmatpush.msra.mxu0 %v627
        %1025 = vmatpush.msra.mxu0 %v623
        %1026 = vmatpush.msra.mxu0 %v619
        %1027 = vmatpush.msra.mxu0 %v615
        %1028 = vmatpush.msra.mxu0 %v611
        %1029 = vmatpush.msra.mxu0 %v607
        %1030 = vmatpush.msra.mxu0 %v603
        %1031 = vmatpush.msra.mxu0 %v599
        %1032 = vmatmul.f32.gmra.mxu0 %v968
        %v1033 = vpop.f32.mrf.mxu0
        %v1034 = vadd.f32 0.0, %v1033
        %1035 = vdwg.mxu0
        %1036 = vmatpush.msra.mxu0 %v660
        %1037 = vmatpush.msra.mxu0 %v656
        %1038 = vmatpush.msra.mxu0 %v652
        %1039 = vmatpush.msra.mxu0 %v648
        %1040 = vmatpush.msra.mxu0 %v644
        %1041 = vmatpush.msra.mxu0 %v640
        %1042 = vmatpush.msra.mxu0 %v636
        %1043 = vmatpush.msra.mxu0 %v632
        %1044 = vmatpush.msra.mxu0 %v628
        %1045 = vmatpush.msra.mxu0 %v624
        %1046 = vmatpush.msra.mxu0 %v620
        %1047 = vmatpush.msra.mxu0 %v616
        %1048 = vmatpush.msra.mxu0 %v612
        %1049 = vmatpush.msra.mxu0 %v608
        %1050 = vmatpush.msra.mxu0 %v604
        %1051 = vmatpush.msra.mxu0 %v600
        %1052 = vmatmul.f32.gmra.mxu0 %v968
        %v1053 = vpop.f32.mrf.mxu0
        %v1054 = vadd.f32 0.0, %v1053
        %1055 = vdwg.mxu0
        %v1056 = vadd.f32 %v972, %v994
        %v1057 = vadd.f32 %v973, %v1014
        %v1058 = vadd.f32 %v974, %v1034
        %v1059 = vadd.f32 %v975, %v1054
        %v1060 = vxor.u32 %v1056, 2147483648
        %v1061 = vmul.f32 %v1060, 1.442695
        %v1062 = vpow.pop %v1061
        %v1063 = vadd.f32 %v1062, 1.0
        %v1064 = vrcp.pop %v1063
        %v1065 = vmul.f32 %v1063, %v1064
        %v1066 = vsub.f32 1.0, %v1065
        %v1067 = vmul.f32 %v1064, %v1066
        %v1068 = vadd.f32 %v1064, %v1067
        %vm1069 = vweird.f32 %v1063
        %vm1070 = vweird.f32 %v1064
        %vm1071 = vmor %vm1069, %vm1070
        %v1072 = vsel %vm1071, %v1064, %v1068
        %v1073 = vand.u32 2147483647, %v1063
        %vm1074 = vcmp.eq.f32.partialorder %v1073, 8.507059e+37
        %v1075 = vand.u32 %v1063, 2147483648
        %v1076 = vor.u32 1.1754944e-38, %v1075
        %v1077 = vsel %vm1074, %v1076, %v1072
        %v1078 = vmul.f32 1.0, %v1077
        %v1079 = vxor.u32 %v1057, 2147483648
        %v1080 = vmul.f32 %v1079, 1.442695
        %v1081 = vpow.pop %v1080
        %v1082 = vadd.f32 %v1081, 1.0
        %v1083 = vrcp.pop %v1082
        %v1084 = vmul.f32 %v1082, %v1083
        %v1085 = vsub.f32 1.0, %v1084
        %v1086 = vmul.f32 %v1083, %v1085
        %v1087 = vadd.f32 %v1083, %v1086
        %vm1088 = vweird.f32 %v1082
        %vm1089 = vweird.f32 %v1083
        %vm1090 = vmor %vm1088, %vm1089
        %v1091 = vsel %vm1090, %v1083, %v1087
        %v1092 = vand.u32 2147483647, %v1082
        %vm1093 = vcmp.eq.f32.partialorder %v1092, 8.507059e+37
        %v1094 = vand.u32 %v1082, 2147483648
        %v1095 = vor.u32 1.1754944e-38, %v1094
        %v1096 = vsel %vm1093, %v1095, %v1091
        %v1097 = vmul.f32 1.0, %v1096
        %v1098 = vtanh.pop %v1058
        %v1099 = vxor.u32 %v1059, 2147483648
        %v1100 = vmul.f32 %v1099, 1.442695
        %v1101 = vpow.pop %v1100
        %v1102 = vadd.f32 %v1101, 1.0
        %v1103 = vrcp.pop %v1102
        %v1104 = vmul.f32 %v1102, %v1103
        %v1105 = vsub.f32 1.0, %v1104
        %v1106 = vmul.f32 %v1103, %v1105
        %v1107 = vadd.f32 %v1103, %v1106
        %vm1108 = vweird.f32 %v1102
        %vm1109 = vweird.f32 %v1103
        %vm1110 = vmor %vm1108, %vm1109
        %v1111 = vsel %vm1110, %v1103, %v1107
        %v1112 = vand.u32 2147483647, %v1102
        %vm1113 = vcmp.eq.f32.partialorder %v1112, 8.507059e+37
        %v1114 = vand.u32 %v1102, 2147483648
        %v1115 = vor.u32 1.1754944e-38, %v1114
        %v1116 = vsel %vm1113, %v1115, %v1111
        %v1117 = vmul.f32 1.0, %v1116
        %v1118 = vmul.f32 %v1097, %v966
        %v1119 = vmul.f32 %v1078, %v1098
        %v1120 = vadd.f32 %v1118, %v1119
        %v1121 = vtanh.pop %v1120
        %v1122 = vmul.f32 %v1117, %v1121
        %s1123 = smul.u32 3, 4
        %s1124 = smul.addr %s1123, 8
        %s1125 = scalar_lea.vmem [#allocation2], %s1124
        %v1126 = vld [vmem:[%s1125] sm:$0xff]
        %v1127 = vld [vmem:[%s1125 + $0x8] sm:$0xff]
        %v1128 = vld [vmem:[%s1125 + $0x10] sm:$0xff]
        %v1129 = vld [vmem:[%s1125 + $0x18] sm:$0xff]
        %1130 = vmatpush.msra.mxu0 %v657
        %1131 = vmatpush.msra.mxu0 %v653
        %1132 = vmatpush.msra.mxu0 %v649
        %1133 = vmatpush.msra.mxu0 %v645
        %1134 = vmatpush.msra.mxu0 %v641
        %1135 = vmatpush.msra.mxu0 %v637
        %1136 = vmatpush.msra.mxu0 %v633
        %1137 = vmatpush.msra.mxu0 %v629
        %1138 = vmatpush.msra.mxu0 %v625
        %1139 = vmatpush.msra.mxu0 %v621
        %1140 = vmatpush.msra.mxu0 %v617
        %1141 = vmatpush.msra.mxu0 %v613
        %1142 = vmatpush.msra.mxu0 %v609
        %1143 = vmatpush.msra.mxu0 %v605
        %1144 = vmatpush.msra.mxu0 %v601
        %1145 = vmatpush.msra.mxu0 %v597
        %1146 = vmatmul.f32.gmra.mxu0 %v1122
        %v1147 = vpop.f32.mrf.mxu0
        %v1148 = vadd.f32 0.0, %v1147
        %1149 = vdwg.mxu0
        %1150 = vmatpush.msra.mxu0 %v658
        %1151 = vmatpush.msra.mxu0 %v654
        %1152 = vmatpush.msra.mxu0 %v650
        %1153 = vmatpush.msra.mxu0 %v646
        %1154 = vmatpush.msra.mxu0 %v642
        %1155 = vmatpush.msra.mxu0 %v638
        %1156 = vmatpush.msra.mxu0 %v634
        %1157 = vmatpush.msra.mxu0 %v630
        %1158 = vmatpush.msra.mxu0 %v626
        %1159 = vmatpush.msra.mxu0 %v622
        %1160 = vmatpush.msra.mxu0 %v618
        %1161 = vmatpush.msra.mxu0 %v614
        %1162 = vmatpush.msra.mxu0 %v610
        %1163 = vmatpush.msra.mxu0 %v606
        %1164 = vmatpush.msra.mxu0 %v602
        %1165 = vmatpush.msra.mxu0 %v598
        %1166 = vmatmul.f32.gmra.mxu0 %v1122
        %v1167 = vpop.f32.mrf.mxu0
        %v1168 = vadd.f32 0.0, %v1167
        %1169 = vdwg.mxu0
        %1170 = vmatpush.msra.mxu0 %v659
        %1171 = vmatpush.msra.mxu0 %v655
        %1172 = vmatpush.msra.mxu0 %v651
        %1173 = vmatpush.msra.mxu0 %v647
        %1174 = vmatpush.msra.mxu0 %v643
        %1175 = vmatpush.msra.mxu0 %v639
        %1176 = vmatpush.msra.mxu0 %v635
        %1177 = vmatpush.msra.mxu0 %v631
        %1178 = vmatpush.msra.mxu0 %v627
        %1179 = vmatpush.msra.mxu0 %v623
        %1180 = vmatpush.msra.mxu0 %v619
        %1181 = vmatpush.msra.mxu0 %v615
        %1182 = vmatpush.msra.mxu0 %v611
        %1183 = vmatpush.msra.mxu0 %v607
        %1184 = vmatpush.msra.mxu0 %v603
        %1185 = vmatpush.msra.mxu0 %v599
        %1186 = vmatmul.f32.gmra.mxu0 %v1122
        %v1187 = vpop.f32.mrf.mxu0
        %v1188 = vadd.f32 0.0, %v1187
        %1189 = vdwg.mxu0
        %1190 = vmatpush.msra.mxu0 %v660
        %1191 = vmatpush.msra.mxu0 %v656
        %1192 = vmatpush.msra.mxu0 %v652
        %1193 = vmatpush.msra.mxu0 %v648
        %1194 = vmatpush.msra.mxu0 %v644
        %1195 = vmatpush.msra.mxu0 %v640
        %1196 = vmatpush.msra.mxu0 %v636
        %1197 = vmatpush.msra.mxu0 %v632
        %1198 = vmatpush.msra.mxu0 %v628
        %1199 = vmatpush.msra.mxu0 %v624
        %1200 = vmatpush.msra.mxu0 %v620
        %1201 = vmatpush.msra.mxu0 %v616
        %1202 = vmatpush.msra.mxu0 %v612
        %1203 = vmatpush.msra.mxu0 %v608
        %1204 = vmatpush.msra.mxu0 %v604
        %1205 = vmatpush.msra.mxu0 %v600
        %1206 = vmatmul.f32.gmra.mxu0 %v1122
        %v1207 = vpop.f32.mrf.mxu0
        %v1208 = vadd.f32 0.0, %v1207
        %1209 = vdwg.mxu0
        %v1210 = vadd.f32 %v1126, %v1148
        %v1211 = vadd.f32 %v1127, %v1168
        %v1212 = vadd.f32 %v1128, %v1188
        %v1213 = vadd.f32 %v1129, %v1208
        %v1214 = vxor.u32 %v1210, 2147483648
        %v1215 = vmul.f32 %v1214, 1.442695
        %v1216 = vpow.pop %v1215
        %v1217 = vadd.f32 %v1216, 1.0
        %v1218 = vrcp.pop %v1217
        %v1219 = vmul.f32 %v1217, %v1218
        %v1220 = vsub.f32 1.0, %v1219
        %v1221 = vmul.f32 %v1218, %v1220
        %v1222 = vadd.f32 %v1218, %v1221
        %vm1223 = vweird.f32 %v1217
        %vm1224 = vweird.f32 %v1218
        %vm1225 = vmor %vm1223, %vm1224
        %v1226 = vsel %vm1225, %v1218, %v1222
        %v1227 = vand.u32 2147483647, %v1217
        %vm1228 = vcmp.eq.f32.partialorder %v1227, 8.507059e+37
        %v1229 = vand.u32 %v1217, 2147483648
        %v1230 = vor.u32 1.1754944e-38, %v1229
        %v1231 = vsel %vm1228, %v1230, %v1226
        %v1232 = vmul.f32 1.0, %v1231
        %v1233 = vxor.u32 %v1211, 2147483648
        %v1234 = vmul.f32 %v1233, 1.442695
        %v1235 = vpow.pop %v1234
        %v1236 = vadd.f32 %v1235, 1.0
        %v1237 = vrcp.pop %v1236
        %v1238 = vmul.f32 %v1236, %v1237
        %v1239 = vsub.f32 1.0, %v1238
        %v1240 = vmul.f32 %v1237, %v1239
        %v1241 = vadd.f32 %v1237, %v1240
        %vm1242 = vweird.f32 %v1236
        %vm1243 = vweird.f32 %v1237
        %vm1244 = vmor %vm1242, %vm1243
        %v1245 = vsel %vm1244, %v1237, %v1241
        %v1246 = vand.u32 2147483647, %v1236
        %vm1247 = vcmp.eq.f32.partialorder %v1246, 8.507059e+37
        %v1248 = vand.u32 %v1236, 2147483648
        %v1249 = vor.u32 1.1754944e-38, %v1248
        %v1250 = vsel %vm1247, %v1249, %v1245
        %v1251 = vmul.f32 1.0, %v1250
        %v1252 = vtanh.pop %v1212
        %v1253 = vxor.u32 %v1213, 2147483648
        %v1254 = vmul.f32 %v1253, 1.442695
        %v1255 = vpow.pop %v1254
        %v1256 = vadd.f32 %v1255, 1.0
        %v1257 = vrcp.pop %v1256
        %v1258 = vmul.f32 %v1256, %v1257
        %v1259 = vsub.f32 1.0, %v1258
        %v1260 = vmul.f32 %v1257, %v1259
        %v1261 = vadd.f32 %v1257, %v1260
        %vm1262 = vweird.f32 %v1256
        %vm1263 = vweird.f32 %v1257
        %vm1264 = vmor %vm1262, %vm1263
        %v1265 = vsel %vm1264, %v1257, %v1261
        %v1266 = vand.u32 2147483647, %v1256
        %vm1267 = vcmp.eq.f32.partialorder %v1266, 8.507059e+37
        %v1268 = vand.u32 %v1256, 2147483648
        %v1269 = vor.u32 1.1754944e-38, %v1268
        %v1270 = vsel %vm1267, %v1269, %v1265
        %v1271 = vmul.f32 1.0, %v1270
        %v1272 = vmul.f32 %v1251, %v1120
        %v1273 = vmul.f32 %v1232, %v1252
        %v1274 = vadd.f32 %v1272, %v1273
        %v1275 = vtanh.pop %v1274
        %v1276 = vmul.f32 %v1271, %v1275
        %1277 = vst [vmem:[#allocation3] sm:$0xff] %v1276
        %1278 = vst [vmem:[#allocation4] sm:$0xff] %v1274
        %1279 = vst [vmem:[#allocation16] sm:$0xff] %v1276
        %1280 = vst [vmem:[#allocation17] sm:$0xff] %v1274
        // Predicated region
        $region73: #{tpu_custom_call.1} parent=43 // pred_check
          %p1281 = pneg %p200
        $region74: #{tpu_custom_call.1} parent=43 // pred_check_branch
          %1283 = sbr.rel (%p1281) target = $region76
        $region75: #{tpu_custom_call.1} parent=43 // pred_region
          %1285 = vsyncadd [#allocation7], 0
          %s1286 = smul.addr %s31, 8
          %s1287 = scalar_lea.hbm %s6, %s1286
          %s1289 = sshll.u32 [#allocation16], 4
          %s1290 = int_to_ptr.vmem [resolvable:$true] %s1289
          %s1291 = sshll.u32 %s1287, 4
          %s1292 = int_to_ptr.hbm [resolvable:$true] %s1291
          %1294 = dma.vmem_to_hbm [thread:$0]  %s1290, 128, %s1292, [#allocation7]
        $region76: #{tpu_custom_call.1} parent=43 // pred_fallthru
          _
        // Predicated region
        $region77: #{tpu_custom_call.1} parent=43 // pred_check
          %p1295 = pneg %p226
        $region78: #{tpu_custom_call.1} parent=43 // pred_check_branch
          %1297 = sbr.rel (%p1295) target = $region80
        $region79: #{tpu_custom_call.1} parent=43 // pred_region
          %1299 = vsyncadd [#allocation18], 0
          %s1300 = smul.addr %s31, 8
          %s1301 = scalar_lea.hbm %s7, %s1300
          %s1303 = sshll.u32 [#allocation17], 4
          %s1304 = int_to_ptr.vmem [resolvable:$true] %s1303
          %s1305 = sshll.u32 %s1301, 4
          %s1306 = int_to_ptr.hbm [resolvable:$true] %s1305
          %1308 = dma.vmem_to_hbm [thread:$0]  %s1304, 128, %s1306, [#allocation18]
        $region80: #{tpu_custom_call.1} parent=43 // pred_fallthru
          _
        // Predicated region
        $region81: #{tpu_custom_call.1} parent=43 // pred_check
          %p1309 = pneg %p200
        $region82: #{tpu_custom_call.1} parent=43 // pred_check_branch
          %1311 = sbr.rel (%p1309) target = $region84
        $region83: #{tpu_custom_call.1} parent=43 // pred_region
          %1313 = dma.done [#allocation7], 128
        $region84: #{tpu_custom_call.1} parent=43 // pred_fallthru
          _
        // Predicated region
        $region85: #{tpu_custom_call.1} parent=43 // pred_check
          %p1314 = pneg %p226
        $region86: #{tpu_custom_call.1} parent=43 // pred_check_branch
          %1316 = sbr.rel (%p1314) target = $region88
        $region87: #{tpu_custom_call.1} parent=43 // pred_region
          %1318 = dma.done [#allocation18], 128
        $region88: #{tpu_custom_call.1} parent=43 // pred_fallthru
          _
      $region44: #{tpu_custom_call.1} parent=5 // pred_fallthru
        _
      %p1319 = scmp.le.s32.totalorder 2, %s22
      // Predicated region
      $region89: #{tpu_custom_call.1} parent=5 // pred_check
        %p1320 = pneg %p1319
      $region90: #{tpu_custom_call.1} parent=5 // pred_check_branch
        %1322 = sbr.rel (%p1320) target = $region92
      $region91: #{tpu_custom_call.1} parent=5 // pred_region
        %s1323 = ssub.s32 %s22, 2
      $region92: #{tpu_custom_call.1} parent=5 // pred_fallthru
        _
    $region6: #{tpu_custom_call.1} parent=1 // loop_footer
      %s26 = sadd.s32 1, %s22
    $region7: #{tpu_custom_call.1} parent=1 // loop_footer_branch
      %21 = sbr.rel target = $region3
    $region8: #{tpu_custom_call.1} parent=1 // loop_exit
      _
    %1324 = vsyncpa [#allocation6], 1
    %s1325 = scalar_lea.sflag [#allocation6], 1
    %1326 = vsyncpa %s1325, 1
    %1327 = vsyncpa [#allocation9], 1
    %1328 = vsyncpa [#allocation12], 1
    %1329 = vsyncpa [#allocation15], 1
    %1330 = vsyncpa [#allocation7], 1
    %s1331 = scalar_lea.sflag [#allocation7], 1
    %1332 = vsyncpa %s1331, 1
    %1333 = vsyncpa [#allocation18], 1

</llo_original>
